<compile_context>
chip_gen: v5e
topology: v5e:2x2
jax: 0.10.0
libtpu: 0.0.40
codegen_flags: <defaults>
</compile_context>

<pallas_src>
import functools

import jax
import jax.numpy as jnp
from jax.experimental import pallas as pl
from jax.experimental.pallas import tpu as pltpu


_NEG_SLOPE = 0.01  # PyTorch nn.LeakyReLU default
_BRANCHES = ("des", "tweet", "num_prop", "cat_prop", "num_for_h")
_VMEM_TILE_BUDGET = 40 * 1024 * 1024   # target for our double-buffered tiles
_VMEM_LIMIT_BYTES = 48 * 1024 * 1024   # scoped-VMEM limit handed to Mosaic
                                       # (> budget, < 64 MiB v7x physical)


def _round_up(x, m):
    return ((x + m - 1) // m) * m


def _vmem_tile_bytes(bt, ks, m, itemsize):
    """Rough double-buffered VMEM footprint of one grid step."""
    x_b = 2 * sum(bt * k for k in ks) * itemsize
    w_b = 2 * sum(k * m for k in ks) * itemsize
    b_b = 2 * len(ks) * m * itemsize
    o_b = 2 * len(ks) * bt * m * itemsize
    return x_b + w_b + b_b + o_b


def _fused_kernel(*refs, n_branches, negative_slope):
    # refs layout: [x_0..x_4, w_0..w_4, b_0..b_4, o_0..o_4]
    xs = refs[0:n_branches]
    ws = refs[n_branches:2 * n_branches]
    bs = refs[2 * n_branches:3 * n_branches]
    outs = refs[3 * n_branches:4 * n_branches]
    for x_ref, w_ref, b_ref, o_ref in zip(xs, ws, bs, outs):
        # MXU matmul with f32 accumulation, bias + LeakyReLU on the VPU in f32.
        y = jnp.dot(x_ref[...], w_ref[...], preferred_element_type=jnp.float32)
        y = y + b_ref[...].astype(jnp.float32)
        y = jnp.where(y >= 0, y, negative_slope * y)
        o_ref[...] = y.astype(o_ref.dtype)


def feature_align_new_fea(params, des_tensor, tweets_tensor, num_prop,
                          category_prop, num_for_h, *, block_rows=512):
    """Forward pass of the PyTorch module as a single fused Pallas kernel.

    params[name] = (W, b) with W already stored as (in_dim, align_size)
    (i.e. transposed vs. PyTorch's nn.Linear weight).
    """
    xs = (des_tensor, tweets_tensor, num_prop, category_prop, num_for_h)
    ws = tuple(params[name][0] for name in _BRANCHES)
    bs = tuple(params[name][1].reshape(1, -1) for name in _BRANCHES)

    n = xs[0].shape[0]
    ks = tuple(x.shape[1] for x in xs)
    m = ws[0].shape[1]
    for x, w, b, k in zip(xs, ws, bs, ks):
        assert x.shape == (n, k), (x.shape, n, k)
        assert w.shape == (k, m), (w.shape, k, m)
        assert b.shape == (1, m), (b.shape, m)

    itemsize = jnp.dtype(xs[0].dtype).itemsize

    # Row tile: big enough to sit on the HBM roofline, but
    #   (a) at least 2 grid steps so the "parallel" axis can feed both v7x TCs,
    #   (b) double-buffered tiles stay inside the VMEM budget (v5e-safe).
    bt = min(block_rows, _round_up(pl.cdiv(n, 2), 8))
    while bt > 8 and _vmem_tile_bytes(bt, ks, m, itemsize) > _VMEM_TILE_BUDGET:
        bt = _round_up(max(8, bt // 2), 8)
    if bt >= n:
        bt = n  # single step; block == full array dim is always a legal shape
    grid = (pl.cdiv(n, bt),)

    nb = len(xs)
    kernel = functools.partial(_fused_kernel, n_branches=nb,
                               negative_slope=_NEG_SLOPE)

    x_specs = [pl.BlockSpec((bt, k), lambda i: (i, 0)) for k in ks]
    w_specs = [pl.BlockSpec((k, m), lambda i: (0, 0)) for k in ks]   # resident
    b_specs = [pl.BlockSpec((1, m), lambda i: (0, 0)) for _ in ks]   # resident
    out_specs = [pl.BlockSpec((bt, m), lambda i: (i, 0)) for _ in ks]
    out_shapes = [jax.ShapeDtypeStruct((n, m), x.dtype) for x in xs]

    outs = pl.pallas_call(
        kernel,
        grid=grid,
        in_specs=x_specs + w_specs + b_specs,
        out_specs=out_specs,
        out_shape=out_shapes,
        compiler_params=pltpu.CompilerParams(
            dimension_semantics=("parallel",),
            vmem_limit_bytes=_VMEM_LIMIT_BYTES),
    )(*xs, *ws, *bs)
    return tuple(outs)


def _reference(params, *inputs):
    outs = []
    for name, x in zip(_BRANCHES, inputs):
        w, b = params[name]
        y = x.astype(jnp.float32) @ w.astype(jnp.float32) + b
        outs.append(jax.nn.leaky_relu(y, negative_slope=_NEG_SLOPE).astype(x.dtype))
    return tuple(outs)


def _init_params(key, align_size):
    """Weights stored as (in_dim, out_dim), i.e. already transposed vs PyTorch."""
    dims = {"des": 768, "tweet": 768, "num_prop": 27, "cat_prop": 11,
            "num_for_h": 9}
    params = {}
    for name, in_dim in dims.items():
        key, kw, kb = jax.random.split(key, 3)
        bound = 1.0 / jnp.sqrt(in_dim)
        w = jax.random.uniform(kw, (in_dim, align_size), jnp.float32,
                               -bound, bound)
        b = jax.random.uniform(kb, (align_size,), jnp.float32, -bound, bound)
        params[name] = (w, b)
    return params


if __name__ == "__main__":
    key = jax.random.PRNGKey(0)
    align_size = 128          # lane-dense output (multiple of 128)
    batch = 16                # small demo batch -> bt=8, 2-step parallel grid

    key, k1, k2, k3, k4, k5 = jax.random.split(key, 6)
    des_tensor = jax.random.normal(k1, (batch, 768), jnp.float32)
    tweets_tensor = jax.random.normal(k2, (batch, 768), jnp.float32)
    num_prop = jax.random.normal(k3, (batch, 27), jnp.float32)
    category_prop = jax.random.normal(k4, (batch, 11), jnp.float32)
    num_for_h = jax.random.normal(k5, (batch, 9), jnp.float32)

    params = _init_params(key, align_size)

    outs = feature_align_new_fea(params, des_tensor, tweets_tensor, num_prop,
                                 category_prop, num_for_h)
    outs = jax.block_until_ready(outs)

    refs = _reference(params, des_tensor, tweets_tensor, num_prop,
                      category_prop, num_for_h)

    for o, r in zip(outs, refs):
        assert o.shape == (batch, align_size), o.shape
        assert jnp.allclose(o, r, atol=1e-5, rtol=1e-5), \
            "Pallas output does not match reference"

    print("KERNEL_OK")
</pallas_src>

<mosaic_0001>
module attributes {stable_mosaic.version = 11 : i64} {
  func.func @_fused_kernel(%arg0: i32, %arg1: memref<8x768xf32, #tpu.memory_space<vmem>>, %arg2: memref<8x768xf32, #tpu.memory_space<vmem>>, %arg3: memref<8x27xf32, #tpu.memory_space<vmem>>, %arg4: memref<8x11xf32, #tpu.memory_space<vmem>>, %arg5: memref<8x9xf32, #tpu.memory_space<vmem>>, %arg6: memref<768x128xf32, #tpu.memory_space<vmem>>, %arg7: memref<768x128xf32, #tpu.memory_space<vmem>>, %arg8: memref<27x128xf32, #tpu.memory_space<vmem>>, %arg9: memref<11x128xf32, #tpu.memory_space<vmem>>, %arg10: memref<9x128xf32, #tpu.memory_space<vmem>>, %arg11: memref<1x128xf32, #tpu.memory_space<vmem>>, %arg12: memref<1x128xf32, #tpu.memory_space<vmem>>, %arg13: memref<1x128xf32, #tpu.memory_space<vmem>>, %arg14: memref<1x128xf32, #tpu.memory_space<vmem>>, %arg15: memref<1x128xf32, #tpu.memory_space<vmem>>, %arg16: memref<8x128xf32, #tpu.memory_space<vmem>>, %arg17: memref<8x128xf32, #tpu.memory_space<vmem>>, %arg18: memref<8x128xf32, #tpu.memory_space<vmem>>, %arg19: memref<8x128xf32, #tpu.memory_space<vmem>>, %arg20: memref<8x128xf32, #tpu.memory_space<vmem>>) attributes {dimension_semantics = [#tpu.dimension_semantics<parallel>], iteration_bounds = array<i64: 2>, scalar_prefetch = 0 : i64, scratch_operands = 0 : i64, tpu.core_type = #tpu.core_type<tc>, window_params = [{transform_indices = @transform_0, window_bounds = array<i64: 8, 768>}, {transform_indices = @transform_1, window_bounds = array<i64: 8, 768>}, {transform_indices = @transform_2, window_bounds = array<i64: 8, 27>}, {transform_indices = @transform_3, window_bounds = array<i64: 8, 11>}, {transform_indices = @transform_4, window_bounds = array<i64: 8, 9>}, {pipeline_mode = #tpu.pipeline_mode<synchronous>, transform_indices = @transform_5, window_bounds = array<i64: 768, 128>}, {pipeline_mode = #tpu.pipeline_mode<synchronous>, transform_indices = @transform_6, window_bounds = array<i64: 768, 128>}, {pipeline_mode = #tpu.pipeline_mode<synchronous>, transform_indices = @transform_7, window_bounds = array<i64: 27, 128>}, {pipeline_mode = #tpu.pipeline_mode<synchronous>, transform_indices = @transform_8, window_bounds = array<i64: 11, 128>}, {pipeline_mode = #tpu.pipeline_mode<synchronous>, transform_indices = @transform_9, window_bounds = array<i64: 9, 128>}, {pipeline_mode = #tpu.pipeline_mode<synchronous>, transform_indices = @transform_10, window_bounds = array<i64: 1, 128>}, {pipeline_mode = #tpu.pipeline_mode<synchronous>, transform_indices = @transform_11, window_bounds = array<i64: 1, 128>}, {pipeline_mode = #tpu.pipeline_mode<synchronous>, transform_indices = @transform_12, window_bounds = array<i64: 1, 128>}, {pipeline_mode = #tpu.pipeline_mode<synchronous>, transform_indices = @transform_13, window_bounds = array<i64: 1, 128>}, {pipeline_mode = #tpu.pipeline_mode<synchronous>, transform_indices = @transform_14, window_bounds = array<i64: 1, 128>}, {transform_indices = @transform_15, window_bounds = array<i64: 8, 128>}, {transform_indices = @transform_16, window_bounds = array<i64: 8, 128>}, {transform_indices = @transform_17, window_bounds = array<i64: 8, 128>}, {transform_indices = @transform_18, window_bounds = array<i64: 8, 128>}, {transform_indices = @transform_19, window_bounds = array<i64: 8, 128>}]} {
    %c0 = arith.constant 0 : index
    %c0_0 = arith.constant 0 : index
    %0 = vector.load %arg1[%c0, %c0_0] : memref<8x768xf32, #tpu.memory_space<vmem>>, vector<8x768xf32>
    %c0_1 = arith.constant 0 : index
    %c0_2 = arith.constant 0 : index
    %1 = vector.load %arg6[%c0_1, %c0_2] : memref<768x128xf32, #tpu.memory_space<vmem>>, vector<768x128xf32>
    %cst = arith.constant dense<0.000000e+00> : vector<8x128xf32>
    %2 = tpu.matmul %0, %1, %cst {dimension_numbers = #tpu.dot_dimension_numbers<[1], [0], [0], [1], [0, 0, 1, 1], [], []>} : vector<8x768xf32>, vector<768x128xf32>, vector<8x128xf32> -> vector<8x128xf32>
    %c0_3 = arith.constant 0 : index
    %c0_4 = arith.constant 0 : index
    %3 = vector.load %arg11[%c0_3, %c0_4] : memref<1x128xf32, #tpu.memory_space<vmem>>, vector<1x128xf32>
    %4 = vector.broadcast %3 : vector<1x128xf32> to vector<8x128xf32>
    %5 = arith.addf %2, %4 : vector<8x128xf32>
    %cst_5 = arith.constant 0.000000e+00 : f32
    %6 = vector.broadcast %cst_5 : f32 to vector<8x128xf32>
    %7 = arith.cmpf oge, %5, %6 : vector<8x128xf32>
    %cst_6 = arith.constant 0.00999999977 : f32
    %8 = vector.broadcast %cst_6 : f32 to vector<8x128xf32>
    %9 = arith.mulf %8, %5 : vector<8x128xf32>
    %10 = arith.select %7, %5, %9 : vector<8x128xi1>, vector<8x128xf32>
    %c0_7 = arith.constant 0 : index
    %c0_8 = arith.constant 0 : index
    %11 = vector.load %arg16[%c0_7, %c0_8] : memref<8x128xf32, #tpu.memory_space<vmem>>, vector<8x128xf32>
    tpu.vector_store %arg16[%c0_7, %c0_8], %10 {strides = array<i32>} : memref<8x128xf32, #tpu.memory_space<vmem>>, vector<8x128xf32>,
    %c0_9 = arith.constant 0 : index
    %c0_10 = arith.constant 0 : index
    %12 = vector.load %arg2[%c0_9, %c0_10] : memref<8x768xf32, #tpu.memory_space<vmem>>, vector<8x768xf32>
    %c0_11 = arith.constant 0 : index
    %c0_12 = arith.constant 0 : index
    %13 = vector.load %arg7[%c0_11, %c0_12] : memref<768x128xf32, #tpu.memory_space<vmem>>, vector<768x128xf32>
    %cst_13 = arith.constant dense<0.000000e+00> : vector<8x128xf32>
    %14 = tpu.matmul %12, %13, %cst_13 {dimension_numbers = #tpu.dot_dimension_numbers<[1], [0], [0], [1], [0, 0, 1, 1], [], []>} : vector<8x768xf32>, vector<768x128xf32>, vector<8x128xf32> -> vector<8x128xf32>
    %c0_14 = arith.constant 0 : index
    %c0_15 = arith.constant 0 : index
    %15 = vector.load %arg12[%c0_14, %c0_15] : memref<1x128xf32, #tpu.memory_space<vmem>>, vector<1x128xf32>
    %16 = vector.broadcast %15 : vector<1x128xf32> to vector<8x128xf32>
    %17 = arith.addf %14, %16 : vector<8x128xf32>
    %cst_16 = arith.constant 0.000000e+00 : f32
    %18 = vector.broadcast %cst_16 : f32 to vector<8x128xf32>
    %19 = arith.cmpf oge, %17, %18 : vector<8x128xf32>
    %cst_17 = arith.constant 0.00999999977 : f32
    %20 = vector.broadcast %cst_17 : f32 to vector<8x128xf32>
    %21 = arith.mulf %20, %17 : vector<8x128xf32>
    %22 = arith.select %19, %17, %21 : vector<8x128xi1>, vector<8x128xf32>
    %c0_18 = arith.constant 0 : index
    %c0_19 = arith.constant 0 : index
    %23 = vector.load %arg17[%c0_18, %c0_19] : memref<8x128xf32, #tpu.memory_space<vmem>>, vector<8x128xf32>
    tpu.vector_store %arg17[%c0_18, %c0_19], %22 {strides = array<i32>} : memref<8x128xf32, #tpu.memory_space<vmem>>, vector<8x128xf32>,
    %c0_20 = arith.constant 0 : index
    %c0_21 = arith.constant 0 : index
    %24 = vector.load %arg3[%c0_20, %c0_21] : memref<8x27xf32, #tpu.memory_space<vmem>>, vector<8x27xf32>
    %c0_22 = arith.constant 0 : index
    %c0_23 = arith.constant 0 : index
    %25 = vector.load %arg8[%c0_22, %c0_23] : memref<27x128xf32, #tpu.memory_space<vmem>>, vector<27x128xf32>
    %cst_24 = arith.constant dense<0.000000e+00> : vector<8x128xf32>
    %26 = tpu.matmul %24, %25, %cst_24 {dimension_numbers = #tpu.dot_dimension_numbers<[1], [0], [0], [1], [0, 0, 1, 1], [], []>} : vector<8x27xf32>, vector<27x128xf32>, vector<8x128xf32> -> vector<8x128xf32>
    %c0_25 = arith.constant 0 : index
    %c0_26 = arith.constant 0 : index
    %27 = vector.load %arg13[%c0_25, %c0_26] : memref<1x128xf32, #tpu.memory_space<vmem>>, vector<1x128xf32>
    %28 = vector.broadcast %27 : vector<1x128xf32> to vector<8x128xf32>
    %29 = arith.addf %26, %28 : vector<8x128xf32>
    %cst_27 = arith.constant 0.000000e+00 : f32
    %30 = vector.broadcast %cst_27 : f32 to vector<8x128xf32>
    %31 = arith.cmpf oge, %29, %30 : vector<8x128xf32>
    %cst_28 = arith.constant 0.00999999977 : f32
    %32 = vector.broadcast %cst_28 : f32 to vector<8x128xf32>
    %33 = arith.mulf %32, %29 : vector<8x128xf32>
    %34 = arith.select %31, %29, %33 : vector<8x128xi1>, vector<8x128xf32>
    %c0_29 = arith.constant 0 : index
    %c0_30 = arith.constant 0 : index
    %35 = vector.load %arg18[%c0_29, %c0_30] : memref<8x128xf32, #tpu.memory_space<vmem>>, vector<8x128xf32>
    tpu.vector_store %arg18[%c0_29, %c0_30], %34 {strides = array<i32>} : memref<8x128xf32, #tpu.memory_space<vmem>>, vector<8x128xf32>,
    %c0_31 = arith.constant 0 : index
    %c0_32 = arith.constant 0 : index
    %36 = vector.load %arg4[%c0_31, %c0_32] : memref<8x11xf32, #tpu.memory_space<vmem>>, vector<8x11xf32>
    %c0_33 = arith.constant 0 : index
    %c0_34 = arith.constant 0 : index
    %37 = vector.load %arg9[%c0_33, %c0_34] : memref<11x128xf32, #tpu.memory_space<vmem>>, vector<11x128xf32>
    %cst_35 = arith.constant dense<0.000000e+00> : vector<8x128xf32>
    %38 = tpu.matmul %36, %37, %cst_35 {dimension_numbers = #tpu.dot_dimension_numbers<[1], [0], [0], [1], [0, 0, 1, 1], [], []>} : vector<8x11xf32>, vector<11x128xf32>, vector<8x128xf32> -> vector<8x128xf32>
    %c0_36 = arith.constant 0 : index
    %c0_37 = arith.constant 0 : index
    %39 = vector.load %arg14[%c0_36, %c0_37] : memref<1x128xf32, #tpu.memory_space<vmem>>, vector<1x128xf32>
    %40 = vector.broadcast %39 : vector<1x128xf32> to vector<8x128xf32>
    %41 = arith.addf %38, %40 : vector<8x128xf32>
    %cst_38 = arith.constant 0.000000e+00 : f32
    %42 = vector.broadcast %cst_38 : f32 to vector<8x128xf32>
    %43 = arith.cmpf oge, %41, %42 : vector<8x128xf32>
    %cst_39 = arith.constant 0.00999999977 : f32
    %44 = vector.broadcast %cst_39 : f32 to vector<8x128xf32>
    %45 = arith.mulf %44, %41 : vector<8x128xf32>
    %46 = arith.select %43, %41, %45 : vector<8x128xi1>, vector<8x128xf32>
    %c0_40 = arith.constant 0 : index
    %c0_41 = arith.constant 0 : index
    %47 = vector.load %arg19[%c0_40, %c0_41] : memref<8x128xf32, #tpu.memory_space<vmem>>, vector<8x128xf32>
    tpu.vector_store %arg19[%c0_40, %c0_41], %46 {strides = array<i32>} : memref<8x128xf32, #tpu.memory_space<vmem>>, vector<8x128xf32>,
    %c0_42 = arith.constant 0 : index
    %c0_43 = arith.constant 0 : index
    %48 = vector.load %arg5[%c0_42, %c0_43] : memref<8x9xf32, #tpu.memory_space<vmem>>, vector<8x9xf32>
    %c0_44 = arith.constant 0 : index
    %c0_45 = arith.constant 0 : index
    %49 = vector.load %arg10[%c0_44, %c0_45] : memref<9x128xf32, #tpu.memory_space<vmem>>, vector<9x128xf32>
    %cst_46 = arith.constant dense<0.000000e+00> : vector<8x128xf32>
    %50 = tpu.matmul %48, %49, %cst_46 {dimension_numbers = #tpu.dot_dimension_numbers<[1], [0], [0], [1], [0, 0, 1, 1], [], []>} : vector<8x9xf32>, vector<9x128xf32>, vector<8x128xf32> -> vector<8x128xf32>
    %c0_47 = arith.constant 0 : index
    %c0_48 = arith.constant 0 : index
    %51 = vector.load %arg15[%c0_47, %c0_48] : memref<1x128xf32, #tpu.memory_space<vmem>>, vector<1x128xf32>
    %52 = vector.broadcast %51 : vector<1x128xf32> to vector<8x128xf32>
    %53 = arith.addf %50, %52 : vector<8x128xf32>
    %cst_49 = arith.constant 0.000000e+00 : f32
    %54 = vector.broadcast %cst_49 : f32 to vector<8x128xf32>
    %55 = arith.cmpf oge, %53, %54 : vector<8x128xf32>
    %cst_50 = arith.constant 0.00999999977 : f32
    %56 = vector.broadcast %cst_50 : f32 to vector<8x128xf32>
    %57 = arith.mulf %56, %53 : vector<8x128xf32>
    %58 = arith.select %55, %53, %57 : vector<8x128xi1>, vector<8x128xf32>
    %c0_51 = arith.constant 0 : index
    %c0_52 = arith.constant 0 : index
    %59 = vector.load %arg20[%c0_51, %c0_52] : memref<8x128xf32, #tpu.memory_space<vmem>>, vector<8x128xf32>
    tpu.vector_store %arg20[%c0_51, %c0_52], %58 {strides = array<i32>} : memref<8x128xf32, #tpu.memory_space<vmem>>, vector<8x128xf32>,
    return
  }
  func.func @transform_0(%arg0: i32) -> (i32, i32) {
    %c0_i32 = arith.constant 0 : i32
    %c0_i32_0 = arith.constant 0 : i32
    return %arg0, %c0_i32 : i32, i32
  }
  func.func @transform_1(%arg0: i32) -> (i32, i32) {
    %c0_i32 = arith.constant 0 : i32
    %c0_i32_0 = arith.constant 0 : i32
    return %arg0, %c0_i32 : i32, i32
  }
  func.func @transform_2(%arg0: i32) -> (i32, i32) {
    %c0_i32 = arith.constant 0 : i32
    %c0_i32_0 = arith.constant 0 : i32
    return %arg0, %c0_i32 : i32, i32
  }
  func.func @transform_3(%arg0: i32) -> (i32, i32) {
    %c0_i32 = arith.constant 0 : i32
    %c0_i32_0 = arith.constant 0 : i32
    return %arg0, %c0_i32 : i32, i32
  }
  func.func @transform_4(%arg0: i32) -> (i32, i32) {
    %c0_i32 = arith.constant 0 : i32
    %c0_i32_0 = arith.constant 0 : i32
    return %arg0, %c0_i32 : i32, i32
  }
  func.func @transform_5(%arg0: i32) -> (i32, i32) {
    %c0_i32 = arith.constant 0 : i32
    %c0_i32_0 = arith.constant 0 : i32
    %c0_i32_1 = arith.constant 0 : i32
    return %c0_i32, %c0_i32_0 : i32, i32
  }
  func.func @transform_6(%arg0: i32) -> (i32, i32) {
    %c0_i32 = arith.constant 0 : i32
    %c0_i32_0 = arith.constant 0 : i32
    %c0_i32_1 = arith.constant 0 : i32
    return %c0_i32, %c0_i32_0 : i32, i32
  }
  func.func @transform_7(%arg0: i32) -> (i32, i32) {
    %c0_i32 = arith.constant 0 : i32
    %c0_i32_0 = arith.constant 0 : i32
    %c0_i32_1 = arith.constant 0 : i32
    return %c0_i32, %c0_i32_0 : i32, i32
  }
  func.func @transform_8(%arg0: i32) -> (i32, i32) {
    %c0_i32 = arith.constant 0 : i32
    %c0_i32_0 = arith.constant 0 : i32
    %c0_i32_1 = arith.constant 0 : i32
    return %c0_i32, %c0_i32_0 : i32, i32
  }
  func.func @transform_9(%arg0: i32) -> (i32, i32) {
    %c0_i32 = arith.constant 0 : i32
    %c0_i32_0 = arith.constant 0 : i32
    %c0_i32_1 = arith.constant 0 : i32
    return %c0_i32, %c0_i32_0 : i32, i32
  }
  func.func @transform_10(%arg0: i32) -> (i32, i32) {
    %c0_i32 = arith.constant 0 : i32
    %c0_i32_0 = arith.constant 0 : i32
    %c0_i32_1 = arith.constant 0 : i32
    return %c0_i32, %c0_i32_0 : i32, i32
  }
  func.func @transform_11(%arg0: i32) -> (i32, i32) {
    %c0_i32 = arith.constant 0 : i32
    %c0_i32_0 = arith.constant 0 : i32
    %c0_i32_1 = arith.constant 0 : i32
    return %c0_i32, %c0_i32_0 : i32, i32
  }
  func.func @transform_12(%arg0: i32) -> (i32, i32) {
    %c0_i32 = arith.constant 0 : i32
    %c0_i32_0 = arith.constant 0 : i32
    %c0_i32_1 = arith.constant 0 : i32
    return %c0_i32, %c0_i32_0 : i32, i32
  }
  func.func @transform_13(%arg0: i32) -> (i32, i32) {
    %c0_i32 = arith.constant 0 : i32
    %c0_i32_0 = arith.constant 0 : i32
    %c0_i32_1 = arith.constant 0 : i32
    return %c0_i32, %c0_i32_0 : i32, i32
  }
  func.func @transform_14(%arg0: i32) -> (i32, i32) {
    %c0_i32 = arith.constant 0 : i32
    %c0_i32_0 = arith.constant 0 : i32
    %c0_i32_1 = arith.constant 0 : i32
    return %c0_i32, %c0_i32_0 : i32, i32
  }
  func.func @transform_15(%arg0: i32) -> (i32, i32) {
    %c0_i32 = arith.constant 0 : i32
    %c0_i32_0 = arith.constant 0 : i32
    return %arg0, %c0_i32 : i32, i32
  }
  func.func @transform_16(%arg0: i32) -> (i32, i32) {
    %c0_i32 = arith.constant 0 : i32
    %c0_i32_0 = arith.constant 0 : i32
    return %arg0, %c0_i32 : i32, i32
  }
  func.func @transform_17(%arg0: i32) -> (i32, i32) {
    %c0_i32 = arith.constant 0 : i32
    %c0_i32_0 = arith.constant 0 : i32
    return %arg0, %c0_i32 : i32, i32
  }
  func.func @transform_18(%arg0: i32) -> (i32, i32) {
    %c0_i32 = arith.constant 0 : i32
    %c0_i32_0 = arith.constant 0 : i32
    return %arg0, %c0_i32 : i32, i32
  }
  func.func @transform_19(%arg0: i32) -> (i32, i32) {
    %c0_i32 = arith.constant 0 : i32
    %c0_i32_0 = arith.constant 0 : i32
    return %arg0, %c0_i32 : i32, i32
  }
}

</mosaic_0001>

<llo_original>
// kernel: tpu_custom_call.1
$region0: #{tpu_custom_call.1}
  #allocation0 [shape = 'u32[]', space=smem, size = 0x4, offset = 0x4, fixed_abs, tag = 'smem constant byte address 0x4 - core index']
  #allocation1 [shape = 'u32[72,128]{1,0:T(1,128)}', space=vmem, size = 0x9000, scoped, tag = 'internal scratch']
  %s0 = inlined_call_operand.hbm [shape: f32[16,768], index: 0, kind: input, shape index: {}]
  %s1 = inlined_call_operand.hbm [shape: f32[16,768], index: 1, kind: input, shape index: {}]
  %s2 = inlined_call_operand.hbm [shape: f32[16,27], index: 2, kind: input, shape index: {}]
  %s3 = inlined_call_operand.hbm [shape: f32[16,11], index: 3, kind: input, shape index: {}]
  %s4 = inlined_call_operand.hbm [shape: f32[16,9], index: 4, kind: input, shape index: {}]
  %s5 = inlined_call_operand.hbm [shape: f32[768,128], index: 5, kind: input, shape index: {}]
  %s6 = inlined_call_operand.hbm [shape: f32[768,128], index: 6, kind: input, shape index: {}]
  %s7 = inlined_call_operand.hbm [shape: f32[27,128], index: 7, kind: input, shape index: {}]
  %s8 = inlined_call_operand.hbm [shape: f32[11,128], index: 8, kind: input, shape index: {}]
  %s9 = inlined_call_operand.hbm [shape: f32[9,128], index: 9, kind: input, shape index: {}]
  %s10 = inlined_call_operand.vmem [shape: f32[1,128], index: 10, kind: input, shape index: {}]
  %s11 = inlined_call_operand.vmem [shape: f32[1,128], index: 11, kind: input, shape index: {}]
  %s12 = inlined_call_operand.vmem [shape: f32[1,128], index: 12, kind: input, shape index: {}]
  %s13 = inlined_call_operand.vmem [shape: f32[1,128], index: 13, kind: input, shape index: {}]
  %s14 = inlined_call_operand.vmem [shape: f32[1,128], index: 14, kind: input, shape index: {}]
  %s15 = inlined_call_operand.hbm [shape: f32[16,128], index: 15, kind: output, shape index: {0}]
  %s16 = inlined_call_operand.hbm [shape: f32[16,128], index: 16, kind: output, shape index: {1}]
  %s17 = inlined_call_operand.hbm [shape: f32[16,128], index: 17, kind: output, shape index: {2}]
  %s18 = inlined_call_operand.hbm [shape: f32[16,128], index: 18, kind: output, shape index: {3}]
  %s19 = inlined_call_operand.hbm [shape: f32[16,128], index: 19, kind: output, shape index: {4}]
  %20 = xla_tuple %s15, %s16, %s17, %s18, %s19
  %s21 = sld [smem:[#allocation0]]
  $region165: #{tpu_custom_call.1} parent=0
    _
  %s23 = ssub.s32 1, %s21
  %s24 = scalar_select 0, %s23, %s21
  $region1: #{tpu_custom_call.1} parent=0
    #allocation2 [shape = 'u8[49152]{0}', space=vmem, size = 0xc000, scoped, tag = 'input window, operand 0']
    #allocation3 [shape = 's32[2]{0}', space=sflag, size = 0x8, scoped, tag = 'scoped memory for tpu_custom_call.1']
    #allocation4 [shape = 's32[2]{0}', space=sflag, size = 0x8, scoped, tag = 'scoped memory for tpu_custom_call.1']
    #allocation5 [shape = 'u8[49152]{0}', space=vmem, size = 0xc000, scoped, tag = 'input window, operand 1']
    #allocation6 [shape = 's32[2]{0}', space=sflag, size = 0x8, scoped, tag = 'scoped memory for tpu_custom_call.1']
    #allocation7 [shape = 'u8[8192]{0}', space=vmem, size = 0x2000, scoped, tag = 'input window, operand 2']
    #allocation8 [shape = 'u8[8192]{0}', space=vmem, size = 0x2000, scoped, tag = 'input window, operand 3']
    #allocation9 [shape = 's32[2]{0}', space=sflag, size = 0x8, scoped, tag = 'scoped memory for tpu_custom_call.1']
    #allocation10 [shape = 'u8[8192]{0}', space=vmem, size = 0x2000, scoped, tag = 'input window, operand 4']
    #allocation11 [shape = 'u8[393216]{0}', space=vmem, size = 0x60000, scoped, tag = 'input window, operand 5, single buffered']
    #allocation12 [shape = 's32[1]{0}', space=sflag, size = 0x4, scoped, tag = 'scoped memory for tpu_custom_call.1']
    #allocation13 [shape = 'u8[393216]{0}', space=vmem, size = 0x60000, scoped, tag = 'input window, operand 6, single buffered']
    #allocation14 [shape = 'u8[16384]{0}', space=vmem, size = 0x4000, scoped, tag = 'input window, operand 7, single buffered']
    #allocation15 [shape = 's32[1]{0}', space=sflag, size = 0x4, scoped, tag = 'scoped memory for tpu_custom_call.1']
    #allocation16 [shape = 'u8[8192]{0}', space=vmem, size = 0x2000, scoped, tag = 'input window, operand 8, single buffered']
    #allocation17 [shape = 'u8[8192]{0}', space=vmem, size = 0x2000, scoped, tag = 'input window, operand 9, single buffered']
    #allocation18 [shape = 's32[1]{0}', space=sflag, size = 0x4, scoped, tag = 'scoped memory for tpu_custom_call.1']
    #allocation19 [shape = 'u8[8192]{0}', space=vmem, size = 0x2000, scoped, tag = 'output window, operand 0']
    #allocation20 [shape = 'u8[8192]{0}', space=vmem, size = 0x2000, scoped, tag = 'output window, operand 1']
    #allocation21 [shape = 's32[2]{0}', space=sflag, size = 0x8, scoped, tag = 'scoped memory for tpu_custom_call.1']
    #allocation22 [shape = 'u8[8192]{0}', space=vmem, size = 0x2000, scoped, tag = 'output window, operand 2']
    #allocation23 [shape = 'u8[8192]{0}', space=vmem, size = 0x2000, scoped, tag = 'output window, operand 3']
    #allocation24 [shape = 's32[2]{0}', space=sflag, size = 0x8, scoped, tag = 'scoped memory for tpu_custom_call.1']
    #allocation25 [shape = 'u8[8192]{0}', space=vmem, size = 0x2000, scoped, tag = 'output window, operand 4']
    %25 = vsyncpa [#allocation3], 0
    %s26 = scalar_lea.sflag [#allocation3], 1
    %27 = vsyncpa %s26, 0
    %28 = vsyncpa [#allocation6], 0
    %s29 = scalar_lea.sflag [#allocation6], 1
    %30 = vsyncpa %s29, 0
    %31 = vsyncpa [#allocation9], 0
    %s32 = scalar_lea.sflag [#allocation9], 1
    %33 = vsyncpa %s32, 0
    %34 = vsyncpa [#allocation12], 0
    %35 = vsyncpa [#allocation15], 0
    %36 = vsyncpa [#allocation18], 0
    %37 = vsyncpa [#allocation4], 0
    %s38 = scalar_lea.sflag [#allocation4], 1
    %39 = vsyncpa %s38, 0
    %40 = vsyncpa [#allocation21], 0
    %s41 = scalar_lea.sflag [#allocation21], 1
    %42 = vsyncpa %s41, 0
    %43 = vsyncpa [#allocation24], 0
    %s44 = scalar_lea.sflag [#allocation24], 1
    %45 = vsyncpa %s44, 0
    loop: start=0, step=1, limit=4
    $region2: #{tpu_custom_call.1} parent=1 // loop_pre_header
      _
    $region3: #{tpu_custom_call.1} parent=1 // loop_header
      %s47 = sphi 0, %s51
      %p48 = scmp.ge.s32.totalorder %s47, 4
      %s57 = sphi 0, %s59
      %s60 = sphi 0, %s57
      %s61 = sphi 0, %s60
      %s77 = sphi 0, %s61
      %s83 = sphi 0, %s85
      %s86 = sphi 0, %s83
      %s87 = sphi 0, %s86
      %s103 = sphi 0, %s87
      %s109 = sphi 0, %s111
      %s112 = sphi 0, %s109
      %s113 = sphi 0, %s112
      %s129 = sphi 0, %s113
      %s135 = sphi 0, %s137
      %s138 = sphi 0, %s135
      %s139 = sphi 0, %s138
      %s155 = sphi 0, %s139
      %s161 = sphi 0, %s163
      %s164 = sphi 0, %s161
      %s165 = sphi 0, %s164
      %s181 = sphi 0, %s165
      %s185 = sphi 0, %s185
      %s187 = sphi 0, %s185
      %s188 = sphi 0, %s187
      %s202 = sphi 0, %s188
      %s206 = sphi 0, %s206
      %s208 = sphi 0, %s206
      %s209 = sphi 0, %s208
      %s223 = sphi 0, %s209
      %s227 = sphi 0, %s227
      %s229 = sphi 0, %s227
      %s230 = sphi 0, %s229
      %s244 = sphi 0, %s230
      %s248 = sphi 0, %s248
      %s250 = sphi 0, %s248
      %s251 = sphi 0, %s250
      %s265 = sphi 0, %s251
      %s269 = sphi 0, %s269
      %s271 = sphi 0, %s269
      %s272 = sphi 0, %s271
      %s286 = sphi 0, %s272
      %s290 = sphi 0, %s290
      %s292 = sphi 0, %s290
      %s293 = sphi 0, %s292
      %s307 = sphi 0, %s293
      %s311 = sphi 0, %s311
      %s313 = sphi 0, %s311
      %s314 = sphi 0, %s313
      %s328 = sphi 0, %s314
      %s332 = sphi 0, %s332
      %s334 = sphi 0, %s332
      %s335 = sphi 0, %s334
      %s349 = sphi 0, %s335
      %s353 = sphi 0, %s353
      %s355 = sphi 0, %s353
      %s356 = sphi 0, %s355
      %s370 = sphi 0, %s356
      %s374 = sphi 0, %s374
      %s376 = sphi 0, %s374
      %s377 = sphi 0, %s376
      %s391 = sphi 0, %s377
      %s397 = sphi 0, %s399
      %s400 = sphi 0, %s397
      %s401 = sphi 0, %s400
      %s417 = sphi 0, %s401
      %s423 = sphi 0, %s425
      %s426 = sphi 0, %s423
      %s427 = sphi 0, %s426
      %s443 = sphi 0, %s427
      %s449 = sphi 0, %s451
      %s452 = sphi 0, %s449
      %s453 = sphi 0, %s452
      %s469 = sphi 0, %s453
      %s475 = sphi 0, %s477
      %s478 = sphi 0, %s475
      %s479 = sphi 0, %s478
      %s495 = sphi 0, %s479
      %s501 = sphi 0, %s503
      %s504 = sphi 0, %s501
      %s505 = sphi 0, %s504
      %s521 = sphi 0, %s505
    $region4: #{tpu_custom_call.1} parent=1 // loop_header_branch
      %50 = sbr.rel (%p48) target = $region8
    $region5: #{tpu_custom_call.1} parent=1 // loop_body
      %s52 = ssub.s32 %s47, 1
      %s53 = ssub.s32 %s47, 2
      %s54 = sadd.s32 %s47, 1
      %s55 = ssub.s32 %s47, %s54
      %p56 = scmp.eq.s32.totalorder %s55, 0
      %s58 = sadd.s32 %s57, 1
      %s59 = scalar_select %p56, %s57, %s58
      %p62 = pneg %p56
      %p63 = scmp.eq.s32.totalorder %s47, 1
      %p64 = por %p62, %p63
      %p65 = scmp.ne.s32.totalorder %s57, %s60
      %p66 = scmp.eq.s32.totalorder %s47, 0
      %p67 = por %p65, %p66
      %p68 = scmp.ne.s32.totalorder %s57, %s60
      %p69 = scmp.eq.s32.totalorder %s52, 1
      %p70 = por %p68, %p69
      %p71 = scmp.ne.s32.totalorder %s60, %s61
      %p72 = scmp.eq.s32.totalorder %s52, 0
      %p73 = por %p71, %p72
      %p74 = scmp.ne.s32.totalorder %s60, %s61
      %p75 = scmp.eq.s32.totalorder %s53, 1
      %p76 = por %p74, %p75
      %p78 = scmp.ne.s32.totalorder %s61, %s77
      %p79 = scmp.eq.s32.totalorder %s53, 0
      %p80 = por %p78, %p79
      %s81 = ssub.s32 %s47, %s54
      %p82 = scmp.eq.s32.totalorder %s81, 0
      %s84 = sadd.s32 %s83, 1
      %s85 = scalar_select %p82, %s83, %s84
      %p88 = pneg %p82
      %p89 = scmp.eq.s32.totalorder %s47, 1
      %p90 = por %p88, %p89
      %p91 = scmp.ne.s32.totalorder %s83, %s86
      %p92 = scmp.eq.s32.totalorder %s47, 0
      %p93 = por %p91, %p92
      %p94 = scmp.ne.s32.totalorder %s83, %s86
      %p95 = scmp.eq.s32.totalorder %s52, 1
      %p96 = por %p94, %p95
      %p97 = scmp.ne.s32.totalorder %s86, %s87
      %p98 = scmp.eq.s32.totalorder %s52, 0
      %p99 = por %p97, %p98
      %p100 = scmp.ne.s32.totalorder %s86, %s87
      %p101 = scmp.eq.s32.totalorder %s53, 1
      %p102 = por %p100, %p101
      %p104 = scmp.ne.s32.totalorder %s87, %s103
      %p105 = scmp.eq.s32.totalorder %s53, 0
      %p106 = por %p104, %p105
      %s107 = ssub.s32 %s47, %s54
      %p108 = scmp.eq.s32.totalorder %s107, 0
      %s110 = sadd.s32 %s109, 1
      %s111 = scalar_select %p108, %s109, %s110
      %p114 = pneg %p108
      %p115 = scmp.eq.s32.totalorder %s47, 1
      %p116 = por %p114, %p115
      %p117 = scmp.ne.s32.totalorder %s109, %s112
      %p118 = scmp.eq.s32.totalorder %s47, 0
      %p119 = por %p117, %p118
      %p120 = scmp.ne.s32.totalorder %s109, %s112
      %p121 = scmp.eq.s32.totalorder %s52, 1
      %p122 = por %p120, %p121
      %p123 = scmp.ne.s32.totalorder %s112, %s113
      %p124 = scmp.eq.s32.totalorder %s52, 0
      %p125 = por %p123, %p124
      %p126 = scmp.ne.s32.totalorder %s112, %s113
      %p127 = scmp.eq.s32.totalorder %s53, 1
      %p128 = por %p126, %p127
      %p130 = scmp.ne.s32.totalorder %s113, %s129
      %p131 = scmp.eq.s32.totalorder %s53, 0
      %p132 = por %p130, %p131
      %s133 = ssub.s32 %s47, %s54
      %p134 = scmp.eq.s32.totalorder %s133, 0
      %s136 = sadd.s32 %s135, 1
      %s137 = scalar_select %p134, %s135, %s136
      %p140 = pneg %p134
      %p141 = scmp.eq.s32.totalorder %s47, 1
      %p142 = por %p140, %p141
      %p143 = scmp.ne.s32.totalorder %s135, %s138
      %p144 = scmp.eq.s32.totalorder %s47, 0
      %p145 = por %p143, %p144
      %p146 = scmp.ne.s32.totalorder %s135, %s138
      %p147 = scmp.eq.s32.totalorder %s52, 1
      %p148 = por %p146, %p147
      %p149 = scmp.ne.s32.totalorder %s138, %s139
      %p150 = scmp.eq.s32.totalorder %s52, 0
      %p151 = por %p149, %p150
      %p152 = scmp.ne.s32.totalorder %s138, %s139
      %p153 = scmp.eq.s32.totalorder %s53, 1
      %p154 = por %p152, %p153
      %p156 = scmp.ne.s32.totalorder %s139, %s155
      %p157 = scmp.eq.s32.totalorder %s53, 0
      %p158 = por %p156, %p157
      %s159 = ssub.s32 %s47, %s54
      %p160 = scmp.eq.s32.totalorder %s159, 0
      %s162 = sadd.s32 %s161, 1
      %s163 = scalar_select %p160, %s161, %s162
      %p166 = pneg %p160
      %p167 = scmp.eq.s32.totalorder %s47, 1
      %p168 = por %p166, %p167
      %p169 = scmp.ne.s32.totalorder %s161, %s164
      %p170 = scmp.eq.s32.totalorder %s47, 0
      %p171 = por %p169, %p170
      %p172 = scmp.ne.s32.totalorder %s161, %s164
      %p173 = scmp.eq.s32.totalorder %s52, 1
      %p174 = por %p172, %p173
      %p175 = scmp.ne.s32.totalorder %s164, %s165
      %p176 = scmp.eq.s32.totalorder %s52, 0
      %p177 = por %p175, %p176
      %p178 = scmp.ne.s32.totalorder %s164, %s165
      %p179 = scmp.eq.s32.totalorder %s53, 1
      %p180 = por %p178, %p179
      %p182 = scmp.ne.s32.totalorder %s165, %s181
      %p183 = scmp.eq.s32.totalorder %s53, 0
      %p184 = por %p182, %p183
      %s186 = sadd.s32 %s185, 1
      %p189 = scmp.eq.s32.totalorder %s47, 1
      %p190 = scmp.ne.s32.totalorder %s185, %s187
      %p191 = scmp.eq.s32.totalorder %s47, 0
      %p192 = por %p190, %p191
      %p193 = scmp.ne.s32.totalorder %s185, %s187
      %p194 = scmp.eq.s32.totalorder %s52, 1
      %p195 = por %p193, %p194
      %p196 = scmp.ne.s32.totalorder %s187, %s188
      %p197 = scmp.eq.s32.totalorder %s52, 0
      %p198 = por %p196, %p197
      %p199 = scmp.ne.s32.totalorder %s187, %s188
      %p200 = scmp.eq.s32.totalorder %s53, 1
      %p201 = por %p199, %p200
      %p203 = scmp.ne.s32.totalorder %s188, %s202
      %p204 = scmp.eq.s32.totalorder %s53, 0
      %p205 = por %p203, %p204
      %s207 = sadd.s32 %s206, 1
      %p210 = scmp.eq.s32.totalorder %s47, 1
      %p211 = scmp.ne.s32.totalorder %s206, %s208
      %p212 = scmp.eq.s32.totalorder %s47, 0
      %p213 = por %p211, %p212
      %p214 = scmp.ne.s32.totalorder %s206, %s208
      %p215 = scmp.eq.s32.totalorder %s52, 1
      %p216 = por %p214, %p215
      %p217 = scmp.ne.s32.totalorder %s208, %s209
      %p218 = scmp.eq.s32.totalorder %s52, 0
      %p219 = por %p217, %p218
      %p220 = scmp.ne.s32.totalorder %s208, %s209
      %p221 = scmp.eq.s32.totalorder %s53, 1
      %p222 = por %p220, %p221
      %p224 = scmp.ne.s32.totalorder %s209, %s223
      %p225 = scmp.eq.s32.totalorder %s53, 0
      %p226 = por %p224, %p225
      %s228 = sadd.s32 %s227, 1
      %p231 = scmp.eq.s32.totalorder %s47, 1
      %p232 = scmp.ne.s32.totalorder %s227, %s229
      %p233 = scmp.eq.s32.totalorder %s47, 0
      %p234 = por %p232, %p233
      %p235 = scmp.ne.s32.totalorder %s227, %s229
      %p236 = scmp.eq.s32.totalorder %s52, 1
      %p237 = por %p235, %p236
      %p238 = scmp.ne.s32.totalorder %s229, %s230
      %p239 = scmp.eq.s32.totalorder %s52, 0
      %p240 = por %p238, %p239
      %p241 = scmp.ne.s32.totalorder %s229, %s230
      %p242 = scmp.eq.s32.totalorder %s53, 1
      %p243 = por %p241, %p242
      %p245 = scmp.ne.s32.totalorder %s230, %s244
      %p246 = scmp.eq.s32.totalorder %s53, 0
      %p247 = por %p245, %p246
      %s249 = sadd.s32 %s248, 1
      %p252 = scmp.eq.s32.totalorder %s47, 1
      %p253 = scmp.ne.s32.totalorder %s248, %s250
      %p254 = scmp.eq.s32.totalorder %s47, 0
      %p255 = por %p253, %p254
      %p256 = scmp.ne.s32.totalorder %s248, %s250
      %p257 = scmp.eq.s32.totalorder %s52, 1
      %p258 = por %p256, %p257
      %p259 = scmp.ne.s32.totalorder %s250, %s251
      %p260 = scmp.eq.s32.totalorder %s52, 0
      %p261 = por %p259, %p260
      %p262 = scmp.ne.s32.totalorder %s250, %s251
      %p263 = scmp.eq.s32.totalorder %s53, 1
      %p264 = por %p262, %p263
      %p266 = scmp.ne.s32.totalorder %s251, %s265
      %p267 = scmp.eq.s32.totalorder %s53, 0
      %p268 = por %p266, %p267
      %s270 = sadd.s32 %s269, 1
      %p273 = scmp.eq.s32.totalorder %s47, 1
      %p274 = scmp.ne.s32.totalorder %s269, %s271
      %p275 = scmp.eq.s32.totalorder %s47, 0
      %p276 = por %p274, %p275
      %p277 = scmp.ne.s32.totalorder %s269, %s271
      %p278 = scmp.eq.s32.totalorder %s52, 1
      %p279 = por %p277, %p278
      %p280 = scmp.ne.s32.totalorder %s271, %s272
      %p281 = scmp.eq.s32.totalorder %s52, 0
      %p282 = por %p280, %p281
      %p283 = scmp.ne.s32.totalorder %s271, %s272
      %p284 = scmp.eq.s32.totalorder %s53, 1
      %p285 = por %p283, %p284
      %p287 = scmp.ne.s32.totalorder %s272, %s286
      %p288 = scmp.eq.s32.totalorder %s53, 0
      %p289 = por %p287, %p288
      %s291 = sadd.s32 %s290, 1
      %p294 = scmp.eq.s32.totalorder %s47, 1
      %p295 = scmp.ne.s32.totalorder %s290, %s292
      %p296 = scmp.eq.s32.totalorder %s47, 0
      %p297 = por %p295, %p296
      %p298 = scmp.ne.s32.totalorder %s290, %s292
      %p299 = scmp.eq.s32.totalorder %s52, 1
      %p300 = por %p298, %p299
      %p301 = scmp.ne.s32.totalorder %s292, %s293
      %p302 = scmp.eq.s32.totalorder %s52, 0
      %p303 = por %p301, %p302
      %p304 = scmp.ne.s32.totalorder %s292, %s293
      %p305 = scmp.eq.s32.totalorder %s53, 1
      %p306 = por %p304, %p305
      %p308 = scmp.ne.s32.totalorder %s293, %s307
      %p309 = scmp.eq.s32.totalorder %s53, 0
      %p310 = por %p308, %p309
      %s312 = sadd.s32 %s311, 1
      %p315 = scmp.eq.s32.totalorder %s47, 1
      %p316 = scmp.ne.s32.totalorder %s311, %s313
      %p317 = scmp.eq.s32.totalorder %s47, 0
      %p318 = por %p316, %p317
      %p319 = scmp.ne.s32.totalorder %s311, %s313
      %p320 = scmp.eq.s32.totalorder %s52, 1
      %p321 = por %p319, %p320
      %p322 = scmp.ne.s32.totalorder %s313, %s314
      %p323 = scmp.eq.s32.totalorder %s52, 0
      %p324 = por %p322, %p323
      %p325 = scmp.ne.s32.totalorder %s313, %s314
      %p326 = scmp.eq.s32.totalorder %s53, 1
      %p327 = por %p325, %p326
      %p329 = scmp.ne.s32.totalorder %s314, %s328
      %p330 = scmp.eq.s32.totalorder %s53, 0
      %p331 = por %p329, %p330
      %s333 = sadd.s32 %s332, 1
      %p336 = scmp.eq.s32.totalorder %s47, 1
      %p337 = scmp.ne.s32.totalorder %s332, %s334
      %p338 = scmp.eq.s32.totalorder %s47, 0
      %p339 = por %p337, %p338
      %p340 = scmp.ne.s32.totalorder %s332, %s334
      %p341 = scmp.eq.s32.totalorder %s52, 1
      %p342 = por %p340, %p341
      %p343 = scmp.ne.s32.totalorder %s334, %s335
      %p344 = scmp.eq.s32.totalorder %s52, 0
      %p345 = por %p343, %p344
      %p346 = scmp.ne.s32.totalorder %s334, %s335
      %p347 = scmp.eq.s32.totalorder %s53, 1
      %p348 = por %p346, %p347
      %p350 = scmp.ne.s32.totalorder %s335, %s349
      %p351 = scmp.eq.s32.totalorder %s53, 0
      %p352 = por %p350, %p351
      %s354 = sadd.s32 %s353, 1
      %p357 = scmp.eq.s32.totalorder %s47, 1
      %p358 = scmp.ne.s32.totalorder %s353, %s355
      %p359 = scmp.eq.s32.totalorder %s47, 0
      %p360 = por %p358, %p359
      %p361 = scmp.ne.s32.totalorder %s353, %s355
      %p362 = scmp.eq.s32.totalorder %s52, 1
      %p363 = por %p361, %p362
      %p364 = scmp.ne.s32.totalorder %s355, %s356
      %p365 = scmp.eq.s32.totalorder %s52, 0
      %p366 = por %p364, %p365
      %p367 = scmp.ne.s32.totalorder %s355, %s356
      %p368 = scmp.eq.s32.totalorder %s53, 1
      %p369 = por %p367, %p368
      %p371 = scmp.ne.s32.totalorder %s356, %s370
      %p372 = scmp.eq.s32.totalorder %s53, 0
      %p373 = por %p371, %p372
      %s375 = sadd.s32 %s374, 1
      %p378 = scmp.eq.s32.totalorder %s47, 1
      %p379 = scmp.ne.s32.totalorder %s374, %s376
      %p380 = scmp.eq.s32.totalorder %s47, 0
      %p381 = por %p379, %p380
      %p382 = scmp.ne.s32.totalorder %s374, %s376
      %p383 = scmp.eq.s32.totalorder %s52, 1
      %p384 = por %p382, %p383
      %p385 = scmp.ne.s32.totalorder %s376, %s377
      %p386 = scmp.eq.s32.totalorder %s52, 0
      %p387 = por %p385, %p386
      %p388 = scmp.ne.s32.totalorder %s376, %s377
      %p389 = scmp.eq.s32.totalorder %s53, 1
      %p390 = por %p388, %p389
      %p392 = scmp.ne.s32.totalorder %s377, %s391
      %p393 = scmp.eq.s32.totalorder %s53, 0
      %p394 = por %p392, %p393
      %s395 = ssub.s32 %s47, %s54
      %p396 = scmp.eq.s32.totalorder %s395, 0
      %s398 = sadd.s32 %s397, 1
      %s399 = scalar_select %p396, %s397, %s398
      %p402 = pneg %p396
      %p403 = scmp.eq.s32.totalorder %s47, 1
      %p404 = por %p402, %p403
      %p405 = scmp.ne.s32.totalorder %s397, %s400
      %p406 = scmp.eq.s32.totalorder %s47, 0
      %p407 = por %p405, %p406
      %p408 = scmp.ne.s32.totalorder %s397, %s400
      %p409 = scmp.eq.s32.totalorder %s52, 1
      %p410 = por %p408, %p409
      %p411 = scmp.ne.s32.totalorder %s400, %s401
      %p412 = scmp.eq.s32.totalorder %s52, 0
      %p413 = por %p411, %p412
      %p414 = scmp.ne.s32.totalorder %s400, %s401
      %p415 = scmp.eq.s32.totalorder %s53, 1
      %p416 = por %p414, %p415
      %p418 = scmp.ne.s32.totalorder %s401, %s417
      %p419 = scmp.eq.s32.totalorder %s53, 0
      %p420 = por %p418, %p419
      %s421 = ssub.s32 %s47, %s54
      %p422 = scmp.eq.s32.totalorder %s421, 0
      %s424 = sadd.s32 %s423, 1
      %s425 = scalar_select %p422, %s423, %s424
      %p428 = pneg %p422
      %p429 = scmp.eq.s32.totalorder %s47, 1
      %p430 = por %p428, %p429
      %p431 = scmp.ne.s32.totalorder %s423, %s426
      %p432 = scmp.eq.s32.totalorder %s47, 0
      %p433 = por %p431, %p432
      %p434 = scmp.ne.s32.totalorder %s423, %s426
      %p435 = scmp.eq.s32.totalorder %s52, 1
      %p436 = por %p434, %p435
      %p437 = scmp.ne.s32.totalorder %s426, %s427
      %p438 = scmp.eq.s32.totalorder %s52, 0
      %p439 = por %p437, %p438
      %p440 = scmp.ne.s32.totalorder %s426, %s427
      %p441 = scmp.eq.s32.totalorder %s53, 1
      %p442 = por %p440, %p441
      %p444 = scmp.ne.s32.totalorder %s427, %s443
      %p445 = scmp.eq.s32.totalorder %s53, 0
      %p446 = por %p444, %p445
      %s447 = ssub.s32 %s47, %s54
      %p448 = scmp.eq.s32.totalorder %s447, 0
      %s450 = sadd.s32 %s449, 1
      %s451 = scalar_select %p448, %s449, %s450
      %p454 = pneg %p448
      %p455 = scmp.eq.s32.totalorder %s47, 1
      %p456 = por %p454, %p455
      %p457 = scmp.ne.s32.totalorder %s449, %s452
      %p458 = scmp.eq.s32.totalorder %s47, 0
      %p459 = por %p457, %p458
      %p460 = scmp.ne.s32.totalorder %s449, %s452
      %p461 = scmp.eq.s32.totalorder %s52, 1
      %p462 = por %p460, %p461
      %p463 = scmp.ne.s32.totalorder %s452, %s453
      %p464 = scmp.eq.s32.totalorder %s52, 0
      %p465 = por %p463, %p464
      %p466 = scmp.ne.s32.totalorder %s452, %s453
      %p467 = scmp.eq.s32.totalorder %s53, 1
      %p468 = por %p466, %p467
      %p470 = scmp.ne.s32.totalorder %s453, %s469
      %p471 = scmp.eq.s32.totalorder %s53, 0
      %p472 = por %p470, %p471
      %s473 = ssub.s32 %s47, %s54
      %p474 = scmp.eq.s32.totalorder %s473, 0
      %s476 = sadd.s32 %s475, 1
      %s477 = scalar_select %p474, %s475, %s476
      %p480 = pneg %p474
      %p481 = scmp.eq.s32.totalorder %s47, 1
      %p482 = por %p480, %p481
      %p483 = scmp.ne.s32.totalorder %s475, %s478
      %p484 = scmp.eq.s32.totalorder %s47, 0
      %p485 = por %p483, %p484
      %p486 = scmp.ne.s32.totalorder %s475, %s478
      %p487 = scmp.eq.s32.totalorder %s52, 1
      %p488 = por %p486, %p487
      %p489 = scmp.ne.s32.totalorder %s478, %s479
      %p490 = scmp.eq.s32.totalorder %s52, 0
      %p491 = por %p489, %p490
      %p492 = scmp.ne.s32.totalorder %s478, %s479
      %p493 = scmp.eq.s32.totalorder %s53, 1
      %p494 = por %p492, %p493
      %p496 = scmp.ne.s32.totalorder %s479, %s495
      %p497 = scmp.eq.s32.totalorder %s53, 0
      %p498 = por %p496, %p497
      %s499 = ssub.s32 %s47, %s54
      %p500 = scmp.eq.s32.totalorder %s499, 0
      %s502 = sadd.s32 %s501, 1
      %s503 = scalar_select %p500, %s501, %s502
      %p506 = pneg %p500
      %p507 = scmp.eq.s32.totalorder %s47, 1
      %p508 = por %p506, %p507
      %p509 = scmp.ne.s32.totalorder %s501, %s504
      %p510 = scmp.eq.s32.totalorder %s47, 0
      %p511 = por %p509, %p510
      %p512 = scmp.ne.s32.totalorder %s501, %s504
      %p513 = scmp.eq.s32.totalorder %s52, 1
      %p514 = por %p512, %p513
      %p515 = scmp.ne.s32.totalorder %s504, %s505
      %p516 = scmp.eq.s32.totalorder %s52, 0
      %p517 = por %p515, %p516
      %p518 = scmp.ne.s32.totalorder %s504, %s505
      %p519 = scmp.eq.s32.totalorder %s53, 1
      %p520 = por %p518, %p519
      %p522 = scmp.ne.s32.totalorder %s505, %s521
      %p523 = scmp.eq.s32.totalorder %s53, 0
      %p524 = por %p522, %p523
      %p525 = scmp.le.s32.totalorder 1, %s47
      %p526 = scmp.lt.s32.totalorder %s47, 3
      %p527 = pnand %p525, %p526
      %p528 = pneg %p527
      // Predicated region
      $region9: #{tpu_custom_call.1} parent=5 // pred_check
        _
      $region10: #{tpu_custom_call.1} parent=5 // pred_check_branch
        %530 = sbr.rel (%p527) target = $region12
      $region11: #{tpu_custom_call.1} parent=5 // pred_region
        %s531 = ssub.s32 %s47, 1
        // Predicated region
        $region13: #{tpu_custom_call.1} parent=11 // pred_check
          %p532 = pneg %p198
        $region14: #{tpu_custom_call.1} parent=11 // pred_check_branch
          %534 = sbr.rel (%p532) target = $region16
        $region15: #{tpu_custom_call.1} parent=11 // pred_region
          %536 = vsyncadd [#allocation12], 0
          %s537 = sshll.u32 %s5, 4
          %s538 = int_to_ptr.hbm [resolvable:$true] %s537
          %s539 = sshll.u32 [#allocation11], 4
          %s540 = int_to_ptr.vmem [resolvable:$true] %s539
          %545 = dma.hbm_to_vmem [thread:$0]  %s538, 12288, %s540, [#allocation12], 128, 128, 8
        $region16: #{tpu_custom_call.1} parent=11 // pred_fallthru
          _
        // Predicated region
        $region17: #{tpu_custom_call.1} parent=11 // pred_check
          %p546 = pneg %p219
        $region18: #{tpu_custom_call.1} parent=11 // pred_check_branch
          %548 = sbr.rel (%p546) target = $region20
        $region19: #{tpu_custom_call.1} parent=11 // pred_region
          %550 = vsyncadd [#allocation12], 0
          %s551 = sshll.u32 %s6, 4
          %s552 = int_to_ptr.hbm [resolvable:$true] %s551
          %s553 = sshll.u32 [#allocation13], 4
          %s554 = int_to_ptr.vmem [resolvable:$true] %s553
          %559 = dma.hbm_to_vmem [thread:$0]  %s552, 12288, %s554, [#allocation12], 128, 128, 8
        $region20: #{tpu_custom_call.1} parent=11 // pred_fallthru
          _
        // Predicated region
        $region21: #{tpu_custom_call.1} parent=11 // pred_check
          %p560 = pneg %p240
        $region22: #{tpu_custom_call.1} parent=11 // pred_check_branch
          %562 = sbr.rel (%p560) target = $region24
        $region23: #{tpu_custom_call.1} parent=11 // pred_region
          %564 = vsyncadd [#allocation15], 0
          %s565 = sshll.u32 %s7, 4
          %s566 = int_to_ptr.hbm [resolvable:$true] %s565
          %s567 = sshll.u32 [#allocation14], 4
          %s568 = int_to_ptr.vmem [resolvable:$true] %s567
          %573 = dma.hbm_to_vmem [thread:$0]  %s566, 512, %s568, [#allocation15], 128, 128, 8
        $region24: #{tpu_custom_call.1} parent=11 // pred_fallthru
          _
        // Predicated region
        $region25: #{tpu_custom_call.1} parent=11 // pred_check
          %p574 = pneg %p261
        $region26: #{tpu_custom_call.1} parent=11 // pred_check_branch
          %576 = sbr.rel (%p574) target = $region28
        $region27: #{tpu_custom_call.1} parent=11 // pred_region
          %578 = vsyncadd [#allocation15], 0
          %s579 = sshll.u32 %s8, 4
          %s580 = int_to_ptr.hbm [resolvable:$true] %s579
          %s581 = sshll.u32 [#allocation16], 4
          %s582 = int_to_ptr.vmem [resolvable:$true] %s581
          %587 = dma.hbm_to_vmem [thread:$0]  %s580, 256, %s582, [#allocation15], 128, 128, 8
        $region28: #{tpu_custom_call.1} parent=11 // pred_fallthru
          _
        // Predicated region
        $region29: #{tpu_custom_call.1} parent=11 // pred_check
          %p588 = pneg %p282
        $region30: #{tpu_custom_call.1} parent=11 // pred_check_branch
          %590 = sbr.rel (%p588) target = $region32
        $region31: #{tpu_custom_call.1} parent=11 // pred_region
          %592 = vsyncadd [#allocation18], 0
          %s593 = sshll.u32 %s9, 4
          %s594 = int_to_ptr.hbm [resolvable:$true] %s593
          %s595 = sshll.u32 [#allocation17], 4
          %s596 = int_to_ptr.vmem [resolvable:$true] %s595
          %601 = dma.hbm_to_vmem [thread:$0]  %s594, 256, %s596, [#allocation18], 128, 128, 8
        $region32: #{tpu_custom_call.1} parent=11 // pred_fallthru
          _
        // Predicated region
        $region33: #{tpu_custom_call.1} parent=11 // pred_check
          %p602 = pneg %p303
        $region34: #{tpu_custom_call.1} parent=11 // pred_check_branch
          %604 = sbr.rel (%p602) target = $region36
        $region35: #{tpu_custom_call.1} parent=11 // pred_region
          _
        $region36: #{tpu_custom_call.1} parent=11 // pred_fallthru
          _
        // Predicated region
        $region37: #{tpu_custom_call.1} parent=11 // pred_check
          %p605 = pneg %p324
        $region38: #{tpu_custom_call.1} parent=11 // pred_check_branch
          %607 = sbr.rel (%p605) target = $region40
        $region39: #{tpu_custom_call.1} parent=11 // pred_region
          _
        $region40: #{tpu_custom_call.1} parent=11 // pred_fallthru
          _
        // Predicated region
        $region41: #{tpu_custom_call.1} parent=11 // pred_check
          %p608 = pneg %p345
        $region42: #{tpu_custom_call.1} parent=11 // pred_check_branch
          %610 = sbr.rel (%p608) target = $region44
        $region43: #{tpu_custom_call.1} parent=11 // pred_region
          _
        $region44: #{tpu_custom_call.1} parent=11 // pred_fallthru
          _
        // Predicated region
        $region45: #{tpu_custom_call.1} parent=11 // pred_check
          %p611 = pneg %p366
        $region46: #{tpu_custom_call.1} parent=11 // pred_check_branch
          %613 = sbr.rel (%p611) target = $region48
        $region47: #{tpu_custom_call.1} parent=11 // pred_region
          _
        $region48: #{tpu_custom_call.1} parent=11 // pred_fallthru
          _
        // Predicated region
        $region49: #{tpu_custom_call.1} parent=11 // pred_check
          %p614 = pneg %p387
        $region50: #{tpu_custom_call.1} parent=11 // pred_check_branch
          %616 = sbr.rel (%p614) target = $region52
        $region51: #{tpu_custom_call.1} parent=11 // pred_region
          _
        $region52: #{tpu_custom_call.1} parent=11 // pred_fallthru
          _
      $region12: #{tpu_custom_call.1} parent=5 // pred_fallthru
        _
      %p617 = scmp.lt.s32.totalorder %s47, 2
      // Predicated region
      $region53: #{tpu_custom_call.1} parent=5 // pred_check
        %p618 = pneg %p617
      $region54: #{tpu_custom_call.1} parent=5 // pred_check_branch
        %620 = sbr.rel (%p618) target = $region56
      $region55: #{tpu_custom_call.1} parent=5 // pred_region
        // Predicated region
        $region57: #{tpu_custom_call.1} parent=55 // pred_check
          %p621 = pneg %p67
        $region58: #{tpu_custom_call.1} parent=55 // pred_check_branch
          %623 = sbr.rel (%p621) target = $region60
        $region59: #{tpu_custom_call.1} parent=55 // pred_region
          %s624 = sand.u32 %s57, 1
          %s625 = scalar_lea.sflag [#allocation3], %s624
          %s626 = sand.u32 %s57, 1
          %s627 = smul.addr %s626, 48
          %s628 = scalar_lea.vmem [#allocation2], %s627
          %630 = vsyncadd %s625, 0
          %s631 = smul.addr %s47, 6
          %s632 = smul.addr %s631, 8
          %s633 = scalar_lea.hbm %s0, %s632
          %s635 = sshll.u32 %s633, 4
          %s636 = int_to_ptr.hbm [resolvable:$true] %s635
          %s637 = sshll.u32 %s628, 4
          %s638 = int_to_ptr.vmem [resolvable:$true] %s637
          %640 = dma.hbm_to_vmem [thread:$0]  %s636, 768, %s638, %s625
        $region60: #{tpu_custom_call.1} parent=55 // pred_fallthru
          _
        // Predicated region
        $region61: #{tpu_custom_call.1} parent=55 // pred_check
          %p641 = pneg %p93
        $region62: #{tpu_custom_call.1} parent=55 // pred_check_branch
          %643 = sbr.rel (%p641) target = $region64
        $region63: #{tpu_custom_call.1} parent=55 // pred_region
          %s644 = sand.u32 %s47, 1
          %s645 = scalar_lea.sflag [#allocation6], %s644
          %s646 = sand.u32 %s83, 1
          %s647 = smul.addr %s646, 48
          %s648 = scalar_lea.vmem [#allocation5], %s647
          %650 = vsyncadd %s645, 0
          %s651 = smul.addr %s47, 6
          %s652 = smul.addr %s651, 8
          %s653 = scalar_lea.hbm %s1, %s652
          %s655 = sshll.u32 %s653, 4
          %s656 = int_to_ptr.hbm [resolvable:$true] %s655
          %s657 = sshll.u32 %s648, 4
          %s658 = int_to_ptr.vmem [resolvable:$true] %s657
          %660 = dma.hbm_to_vmem [thread:$0]  %s656, 768, %s658, %s645
        $region64: #{tpu_custom_call.1} parent=55 // pred_fallthru
          _
        // Predicated region
        $region65: #{tpu_custom_call.1} parent=55 // pred_check
          %p661 = pneg %p119
        $region66: #{tpu_custom_call.1} parent=55 // pred_check_branch
          %663 = sbr.rel (%p661) target = $region68
        $region67: #{tpu_custom_call.1} parent=55 // pred_region
          %s664 = sand.u32 %s47, 1
          %s665 = scalar_lea.sflag [#allocation6], %s664
          %s666 = sand.u32 %s109, 1
          %s667 = smul.addr %s666, 8
          %s668 = scalar_lea.vmem [#allocation7], %s667
          %670 = vsyncadd %s665, 0
          %s671 = smul.addr %s47, 8
          %s672 = scalar_lea.hbm %s2, %s671
          %s674 = sshll.u32 %s672, 4
          %s675 = int_to_ptr.hbm [resolvable:$true] %s674
          %s676 = sshll.u32 %s668, 4
          %s677 = int_to_ptr.vmem [resolvable:$true] %s676
          %679 = dma.hbm_to_vmem [thread:$0]  %s675, 128, %s677, %s665
        $region68: #{tpu_custom_call.1} parent=55 // pred_fallthru
          _
        // Predicated region
        $region69: #{tpu_custom_call.1} parent=55 // pred_check
          %p680 = pneg %p145
        $region70: #{tpu_custom_call.1} parent=55 // pred_check_branch
          %682 = sbr.rel (%p680) target = $region72
        $region71: #{tpu_custom_call.1} parent=55 // pred_region
          %s683 = sand.u32 %s47, 1
          %s684 = scalar_lea.sflag [#allocation9], %s683
          %s685 = sand.u32 %s135, 1
          %s686 = smul.addr %s685, 8
          %s687 = scalar_lea.vmem [#allocation8], %s686
          %689 = vsyncadd %s684, 0
          %s690 = smul.addr %s47, 8
          %s691 = scalar_lea.hbm %s3, %s690
          %s693 = sshll.u32 %s691, 4
          %s694 = int_to_ptr.hbm [resolvable:$true] %s693
          %s695 = sshll.u32 %s687, 4
          %s696 = int_to_ptr.vmem [resolvable:$true] %s695
          %698 = dma.hbm_to_vmem [thread:$0]  %s694, 128, %s696, %s684
        $region72: #{tpu_custom_call.1} parent=55 // pred_fallthru
          _
        // Predicated region
        $region73: #{tpu_custom_call.1} parent=55 // pred_check
          %p699 = pneg %p171
        $region74: #{tpu_custom_call.1} parent=55 // pred_check_branch
          %701 = sbr.rel (%p699) target = $region76
        $region75: #{tpu_custom_call.1} parent=55 // pred_region
          %s702 = sand.u32 %s47, 1
          %s703 = scalar_lea.sflag [#allocation9], %s702
          %s704 = sand.u32 %s161, 1
          %s705 = smul.addr %s704, 8
          %s706 = scalar_lea.vmem [#allocation10], %s705
          %708 = vsyncadd %s703, 0
          %s709 = smul.addr %s47, 8
          %s710 = scalar_lea.hbm %s4, %s709
          %s712 = sshll.u32 %s710, 4
          %s713 = int_to_ptr.hbm [resolvable:$true] %s712
          %s714 = sshll.u32 %s706, 4
          %s715 = int_to_ptr.vmem [resolvable:$true] %s714
          %717 = dma.hbm_to_vmem [thread:$0]  %s713, 128, %s715, %s703
        $region76: #{tpu_custom_call.1} parent=55 // pred_fallthru
          _
      $region56: #{tpu_custom_call.1} parent=5 // pred_fallthru
        _
      %p718 = scmp.le.s32.totalorder 1, %s47
      %p719 = scmp.lt.s32.totalorder %s47, 3
      %p720 = pnand %p718, %p719
      %p721 = pneg %p720
      // Predicated region
      $region77: #{tpu_custom_call.1} parent=5 // pred_check
        _
      $region78: #{tpu_custom_call.1} parent=5 // pred_check_branch
        %723 = sbr.rel (%p720) target = $region80
      $region79: #{tpu_custom_call.1} parent=5 // pred_region
        %s724 = ssub.s32 %s47, 1
        %s725 = sand.u32 %s60, 1
        %s726 = scalar_lea.sflag [#allocation3], %s725
        %s727 = sand.u32 %s60, 1
        %s728 = smul.addr %s727, 48
        %s729 = scalar_lea.vmem [#allocation2], %s728
        // Predicated region
        $region81: #{tpu_custom_call.1} parent=79 // pred_check
          %p730 = pneg %p73
        $region82: #{tpu_custom_call.1} parent=79 // pred_check_branch
          %732 = sbr.rel (%p730) target = $region84
        $region83: #{tpu_custom_call.1} parent=79 // pred_region
          %734 = dma.done %s726, 768
        $region84: #{tpu_custom_call.1} parent=79 // pred_fallthru
          _
        %s735 = sand.u32 %s52, 1
        %s736 = scalar_lea.sflag [#allocation6], %s735
        %s737 = sand.u32 %s86, 1
        %s738 = smul.addr %s737, 48
        %s739 = scalar_lea.vmem [#allocation5], %s738
        // Predicated region
        $region85: #{tpu_custom_call.1} parent=79 // pred_check
          %p740 = pneg %p99
        $region86: #{tpu_custom_call.1} parent=79 // pred_check_branch
          %742 = sbr.rel (%p740) target = $region88
        $region87: #{tpu_custom_call.1} parent=79 // pred_region
          %744 = dma.done %s736, 768
        $region88: #{tpu_custom_call.1} parent=79 // pred_fallthru
          _
        %s745 = sand.u32 %s52, 1
        %s746 = scalar_lea.sflag [#allocation6], %s745
        %s747 = sand.u32 %s112, 1
        %s748 = smul.addr %s747, 8
        %s749 = scalar_lea.vmem [#allocation7], %s748
        // Predicated region
        $region89: #{tpu_custom_call.1} parent=79 // pred_check
          %p750 = pneg %p125
        $region90: #{tpu_custom_call.1} parent=79 // pred_check_branch
          %752 = sbr.rel (%p750) target = $region92
        $region91: #{tpu_custom_call.1} parent=79 // pred_region
          %754 = dma.done %s746, 128
        $region92: #{tpu_custom_call.1} parent=79 // pred_fallthru
          _
        %s755 = sand.u32 %s52, 1
        %s756 = scalar_lea.sflag [#allocation9], %s755
        %s757 = sand.u32 %s138, 1
        %s758 = smul.addr %s757, 8
        %s759 = scalar_lea.vmem [#allocation8], %s758
        // Predicated region
        $region93: #{tpu_custom_call.1} parent=79 // pred_check
          %p760 = pneg %p151
        $region94: #{tpu_custom_call.1} parent=79 // pred_check_branch
          %762 = sbr.rel (%p760) target = $region96
        $region95: #{tpu_custom_call.1} parent=79 // pred_region
          %764 = dma.done %s756, 128
        $region96: #{tpu_custom_call.1} parent=79 // pred_fallthru
          _
        %s765 = sand.u32 %s52, 1
        %s766 = scalar_lea.sflag [#allocation9], %s765
        %s767 = sand.u32 %s164, 1
        %s768 = smul.addr %s767, 8
        %s769 = scalar_lea.vmem [#allocation10], %s768
        // Predicated region
        $region97: #{tpu_custom_call.1} parent=79 // pred_check
          %p770 = pneg %p177
        $region98: #{tpu_custom_call.1} parent=79 // pred_check_branch
          %772 = sbr.rel (%p770) target = $region100
        $region99: #{tpu_custom_call.1} parent=79 // pred_region
          %774 = dma.done %s766, 128
        $region100: #{tpu_custom_call.1} parent=79 // pred_fallthru
          _
        // Predicated region
        $region101: #{tpu_custom_call.1} parent=79 // pred_check
          %p775 = pneg %p198
        $region102: #{tpu_custom_call.1} parent=79 // pred_check_branch
          %777 = sbr.rel (%p775) target = $region104
        $region103: #{tpu_custom_call.1} parent=79 // pred_region
          %779 = dma.done [#allocation12], 12288
        $region104: #{tpu_custom_call.1} parent=79 // pred_fallthru
          _
        // Predicated region
        $region105: #{tpu_custom_call.1} parent=79 // pred_check
          %p780 = pneg %p219
        $region106: #{tpu_custom_call.1} parent=79 // pred_check_branch
          %782 = sbr.rel (%p780) target = $region108
        $region107: #{tpu_custom_call.1} parent=79 // pred_region
          %784 = dma.done [#allocation12], 12288
        $region108: #{tpu_custom_call.1} parent=79 // pred_fallthru
          _
        // Predicated region
        $region109: #{tpu_custom_call.1} parent=79 // pred_check
          %p785 = pneg %p240
        $region110: #{tpu_custom_call.1} parent=79 // pred_check_branch
          %787 = sbr.rel (%p785) target = $region112
        $region111: #{tpu_custom_call.1} parent=79 // pred_region
          %789 = dma.done [#allocation15], 512
        $region112: #{tpu_custom_call.1} parent=79 // pred_fallthru
          _
        // Predicated region
        $region113: #{tpu_custom_call.1} parent=79 // pred_check
          %p790 = pneg %p261
        $region114: #{tpu_custom_call.1} parent=79 // pred_check_branch
          %792 = sbr.rel (%p790) target = $region116
        $region115: #{tpu_custom_call.1} parent=79 // pred_region
          %794 = dma.done [#allocation15], 256
        $region116: #{tpu_custom_call.1} parent=79 // pred_fallthru
          _
        // Predicated region
        $region117: #{tpu_custom_call.1} parent=79 // pred_check
          %p795 = pneg %p282
        $region118: #{tpu_custom_call.1} parent=79 // pred_check_branch
          %797 = sbr.rel (%p795) target = $region120
        $region119: #{tpu_custom_call.1} parent=79 // pred_region
          %799 = dma.done [#allocation18], 256
        $region120: #{tpu_custom_call.1} parent=79 // pred_fallthru
          _
        %s800 = sand.u32 %s60, 1
        %s801 = scalar_lea.sflag [#allocation3], %s800
        %s802 = sand.u32 %s60, 1
        %s803 = smul.addr %s802, 48
        %s804 = scalar_lea.vmem [#allocation2], %s803
        %p805 = pneg %p73
        %p806 = pneg %p70
        %s807 = sand.u32 %s52, 1
        %s808 = scalar_lea.sflag [#allocation6], %s807
        %s809 = sand.u32 %s86, 1
        %s810 = smul.addr %s809, 48
        %s811 = scalar_lea.vmem [#allocation5], %s810
        %p812 = pneg %p99
        %p813 = pneg %p96
        %s814 = sand.u32 %s52, 1
        %s815 = scalar_lea.sflag [#allocation6], %s814
        %s816 = sand.u32 %s112, 1
        %s817 = smul.addr %s816, 8
        %s818 = scalar_lea.vmem [#allocation7], %s817
        %p819 = pneg %p125
        %p820 = pneg %p122
        %s821 = sand.u32 %s52, 1
        %s822 = scalar_lea.sflag [#allocation9], %s821
        %s823 = sand.u32 %s138, 1
        %s824 = smul.addr %s823, 8
        %s825 = scalar_lea.vmem [#allocation8], %s824
        %p826 = pneg %p151
        %p827 = pneg %p148
        %s828 = sand.u32 %s52, 1
        %s829 = scalar_lea.sflag [#allocation9], %s828
        %s830 = sand.u32 %s164, 1
        %s831 = smul.addr %s830, 8
        %s832 = scalar_lea.vmem [#allocation10], %s831
        %p833 = pneg %p177
        %p834 = pneg %p174
        %p835 = pneg %p198
        %p836 = pneg %p195
        %p837 = pneg %p219
        %p838 = pneg %p216
        %p839 = pneg %p240
        %p840 = pneg %p237
        %p841 = pneg %p261
        %p842 = pneg %p258
        %p843 = pneg %p282
        %p844 = pneg %p279
        %p845 = pneg %p303
        %p846 = pneg %p300
        %p847 = pneg %p324
        %p848 = pneg %p321
        %p849 = pneg %p345
        %p850 = pneg %p342
        %p851 = pneg %p366
        %p852 = pneg %p363
        %p853 = pneg %p387
        %p854 = pneg %p384
        %p855 = pneg %p413
        %p856 = pneg %p410
        %s857 = sand.u32 %s400, 1
        %s858 = scalar_lea.sflag [#allocation4], %s857
        %s859 = sand.u32 %s400, 1
        %s860 = smul.addr %s859, 8
        %s861 = scalar_lea.vmem [#allocation19], %s860
        %p862 = pneg %p439
        %p863 = pneg %p436
        %s864 = sand.u32 %s52, 1
        %s865 = scalar_lea.sflag [#allocation21], %s864
        %s866 = sand.u32 %s426, 1
        %s867 = smul.addr %s866, 8
        %s868 = scalar_lea.vmem [#allocation20], %s867
        %p869 = pneg %p465
        %p870 = pneg %p462
        %s871 = sand.u32 %s52, 1
        %s872 = scalar_lea.sflag [#allocation21], %s871
        %s873 = sand.u32 %s452, 1
        %s874 = smul.addr %s873, 8
        %s875 = scalar_lea.vmem [#allocation22], %s874
        %p876 = pneg %p491
        %p877 = pneg %p488
        %s878 = sand.u32 %s52, 1
        %s879 = scalar_lea.sflag [#allocation24], %s878
        %s880 = sand.u32 %s478, 1
        %s881 = smul.addr %s880, 8
        %s882 = scalar_lea.vmem [#allocation23], %s881
        %p883 = pneg %p517
        %p884 = pneg %p514
        %s885 = sand.u32 %s52, 1
        %s886 = scalar_lea.sflag [#allocation24], %s885
        %s887 = sand.u32 %s504, 1
        %s888 = smul.addr %s887, 8
        %s889 = scalar_lea.vmem [#allocation25], %s888
        %v890 = vld [vmem:[%s729] sm:$0xff]
        %v891 = vld [vmem:[%s729 + $0x8] sm:$0xff]
        %v892 = vld [vmem:[%s729 + $0x10] sm:$0xff]
        %v893 = vld [vmem:[%s729 + $0x18] sm:$0xff]
        %v894 = vld [vmem:[%s729 + $0x20] sm:$0xff]
        %v895 = vld [vmem:[%s729 + $0x28] sm:$0xff]
        %v896 = vld [vmem:[#allocation11] sm:$0xff]
        %v897 = vld [vmem:[#allocation11 + $0x8] sm:$0xff]
        %v898 = vld [vmem:[#allocation11 + $0x10] sm:$0xff]
        %v899 = vld [vmem:[#allocation11 + $0x18] sm:$0xff]
        %v900 = vld [vmem:[#allocation11 + $0x20] sm:$0xff]
        %v901 = vld [vmem:[#allocation11 + $0x28] sm:$0xff]
        %v902 = vld [vmem:[#allocation11 + $0x30] sm:$0xff]
        %v903 = vld [vmem:[#allocation11 + $0x38] sm:$0xff]
        %v904 = vld [vmem:[#allocation11 + $0x40] sm:$0xff]
        %v905 = vld [vmem:[#allocation11 + $0x48] sm:$0xff]
        %v906 = vld [vmem:[#allocation11 + $0x50] sm:$0xff]
        %v907 = vld [vmem:[#allocation11 + $0x58] sm:$0xff]
        %v908 = vld [vmem:[#allocation11 + $0x60] sm:$0xff]
        %v909 = vld [vmem:[#allocation11 + $0x68] sm:$0xff]
        %v910 = vld [vmem:[#allocation11 + $0x70] sm:$0xff]
        %v911 = vld [vmem:[#allocation11 + $0x78] sm:$0xff]
        %v912 = vld [vmem:[#allocation11 + $0x80] sm:$0xff]
        %v913 = vld [vmem:[#allocation11 + $0x88] sm:$0xff]
        %v914 = vld [vmem:[#allocation11 + $0x90] sm:$0xff]
        %v915 = vld [vmem:[#allocation11 + $0x98] sm:$0xff]
        %v916 = vld [vmem:[#allocation11 + $0xa0] sm:$0xff]
        %v917 = vld [vmem:[#allocation11 + $0xa8] sm:$0xff]
        %v918 = vld [vmem:[#allocation11 + $0xb0] sm:$0xff]
        %v919 = vld [vmem:[#allocation11 + $0xb8] sm:$0xff]
        %v920 = vld [vmem:[#allocation11 + $0xc0] sm:$0xff]
        %v921 = vld [vmem:[#allocation11 + $0xc8] sm:$0xff]
        %v922 = vld [vmem:[#allocation11 + $0xd0] sm:$0xff]
        %v923 = vld [vmem:[#allocation11 + $0xd8] sm:$0xff]
        %v924 = vld [vmem:[#allocation11 + $0xe0] sm:$0xff]
        %v925 = vld [vmem:[#allocation11 + $0xe8] sm:$0xff]
        %v926 = vld [vmem:[#allocation11 + $0xf0] sm:$0xff]
        %v927 = vld [vmem:[#allocation11 + $0xf8] sm:$0xff]
        %v928 = vld [vmem:[#allocation11 + $0x100] sm:$0xff]
        %v929 = vld [vmem:[#allocation11 + $0x108] sm:$0xff]
        %v930 = vld [vmem:[#allocation11 + $0x110] sm:$0xff]
        %v931 = vld [vmem:[#allocation11 + $0x118] sm:$0xff]
        %v932 = vld [vmem:[#allocation11 + $0x120] sm:$0xff]
        %v933 = vld [vmem:[#allocation11 + $0x128] sm:$0xff]
        %v934 = vld [vmem:[#allocation11 + $0x130] sm:$0xff]
        %v935 = vld [vmem:[#allocation11 + $0x138] sm:$0xff]
        %v936 = vld [vmem:[#allocation11 + $0x140] sm:$0xff]
        %v937 = vld [vmem:[#allocation11 + $0x148] sm:$0xff]
        %v938 = vld [vmem:[#allocation11 + $0x150] sm:$0xff]
        %v939 = vld [vmem:[#allocation11 + $0x158] sm:$0xff]
        %v940 = vld [vmem:[#allocation11 + $0x160] sm:$0xff]
        %v941 = vld [vmem:[#allocation11 + $0x168] sm:$0xff]
        %v942 = vld [vmem:[#allocation11 + $0x170] sm:$0xff]
        %v943 = vld [vmem:[#allocation11 + $0x178] sm:$0xff]
        %v944 = vld [vmem:[#allocation11 + $0x180] sm:$0xff]
        %v945 = vld [vmem:[#allocation11 + $0x188] sm:$0xff]
        %v946 = vld [vmem:[#allocation11 + $0x190] sm:$0xff]
        %v947 = vld [vmem:[#allocation11 + $0x198] sm:$0xff]
        %v948 = vld [vmem:[#allocation11 + $0x1a0] sm:$0xff]
        %v949 = vld [vmem:[#allocation11 + $0x1a8] sm:$0xff]
        %v950 = vld [vmem:[#allocation11 + $0x1b0] sm:$0xff]
        %v951 = vld [vmem:[#allocation11 + $0x1b8] sm:$0xff]
        %v952 = vld [vmem:[#allocation11 + $0x1c0] sm:$0xff]
        %v953 = vld [vmem:[#allocation11 + $0x1c8] sm:$0xff]
        %v954 = vld [vmem:[#allocation11 + $0x1d0] sm:$0xff]
        %v955 = vld [vmem:[#allocation11 + $0x1d8] sm:$0xff]
        %v956 = vld [vmem:[#allocation11 + $0x1e0] sm:$0xff]
        %v957 = vld [vmem:[#allocation11 + $0x1e8] sm:$0xff]
        %v958 = vld [vmem:[#allocation11 + $0x1f0] sm:$0xff]
        %v959 = vld [vmem:[#allocation11 + $0x1f8] sm:$0xff]
        %v960 = vld [vmem:[#allocation11 + $0x200] sm:$0xff]
        %v961 = vld [vmem:[#allocation11 + $0x208] sm:$0xff]
        %v962 = vld [vmem:[#allocation11 + $0x210] sm:$0xff]
        %v963 = vld [vmem:[#allocation11 + $0x218] sm:$0xff]
        %v964 = vld [vmem:[#allocation11 + $0x220] sm:$0xff]
        %v965 = vld [vmem:[#allocation11 + $0x228] sm:$0xff]
        %v966 = vld [vmem:[#allocation11 + $0x230] sm:$0xff]
        %v967 = vld [vmem:[#allocation11 + $0x238] sm:$0xff]
        %v968 = vld [vmem:[#allocation11 + $0x240] sm:$0xff]
        %v969 = vld [vmem:[#allocation11 + $0x248] sm:$0xff]
        %v970 = vld [vmem:[#allocation11 + $0x250] sm:$0xff]
        %v971 = vld [vmem:[#allocation11 + $0x258] sm:$0xff]
        %v972 = vld [vmem:[#allocation11 + $0x260] sm:$0xff]
        %v973 = vld [vmem:[#allocation11 + $0x268] sm:$0xff]
        %v974 = vld [vmem:[#allocation11 + $0x270] sm:$0xff]
        %v975 = vld [vmem:[#allocation11 + $0x278] sm:$0xff]
        %v976 = vld [vmem:[#allocation11 + $0x280] sm:$0xff]
        %v977 = vld [vmem:[#allocation11 + $0x288] sm:$0xff]
        %v978 = vld [vmem:[#allocation11 + $0x290] sm:$0xff]
        %v979 = vld [vmem:[#allocation11 + $0x298] sm:$0xff]
        %v980 = vld [vmem:[#allocation11 + $0x2a0] sm:$0xff]
        %v981 = vld [vmem:[#allocation11 + $0x2a8] sm:$0xff]
        %v982 = vld [vmem:[#allocation11 + $0x2b0] sm:$0xff]
        %v983 = vld [vmem:[#allocation11 + $0x2b8] sm:$0xff]
        %v984 = vld [vmem:[#allocation11 + $0x2c0] sm:$0xff]
        %v985 = vld [vmem:[#allocation11 + $0x2c8] sm:$0xff]
        %v986 = vld [vmem:[#allocation11 + $0x2d0] sm:$0xff]
        %v987 = vld [vmem:[#allocation11 + $0x2d8] sm:$0xff]
        %v988 = vld [vmem:[#allocation11 + $0x2e0] sm:$0xff]
        %v989 = vld [vmem:[#allocation11 + $0x2e8] sm:$0xff]
        %v990 = vld [vmem:[#allocation11 + $0x2f0] sm:$0xff]
        %v991 = vld [vmem:[#allocation11 + $0x2f8] sm:$0xff]
        %v992 = vld [vmem:[%s10] sm:$0x1]
        %v994 = vperm.slane %v992, 0
        %996 = vmatpush.msra.mxu0 %v911
        %997 = vmatpush.msra.mxu0 %v910
        %998 = vmatpush.msra.mxu0 %v909
        %999 = vmatpush.msra.mxu0 %v908
        %1000 = vmatpush.msra.mxu0 %v907
        %1001 = vmatpush.msra.mxu0 %v906
        %1002 = vmatpush.msra.mxu0 %v905
        %1003 = vmatpush.msra.mxu0 %v904
        %1004 = vmatpush.msra.mxu0 %v903
        %1005 = vmatpush.msra.mxu0 %v902
        %1006 = vmatpush.msra.mxu0 %v901
        %1007 = vmatpush.msra.mxu0 %v900
        %1008 = vmatpush.msra.mxu0 %v899
        %1009 = vmatpush.msra.mxu0 %v898
        %1010 = vmatpush.msra.mxu0 %v897
        %1011 = vmatpush.msra.mxu0 %v896
        %1012 = vmatmul.f32.gmra.mxu0 %v890
        %v1013 = vpop.f32.mrf.mxu0
        %v1014 = vadd.f32 %v994, %v1013
        %1015 = vdwg.mxu0
        %1016 = vmatpush.msra.mxu0 %v927
        %1017 = vmatpush.msra.mxu0 %v926
        %1018 = vmatpush.msra.mxu0 %v925
        %1019 = vmatpush.msra.mxu0 %v924
        %1020 = vmatpush.msra.mxu0 %v923
        %1021 = vmatpush.msra.mxu0 %v922
        %1022 = vmatpush.msra.mxu0 %v921
        %1023 = vmatpush.msra.mxu0 %v920
        %1024 = vmatpush.msra.mxu0 %v919
        %1025 = vmatpush.msra.mxu0 %v918
        %1026 = vmatpush.msra.mxu0 %v917
        %1027 = vmatpush.msra.mxu0 %v916
        %1028 = vmatpush.msra.mxu0 %v915
        %1029 = vmatpush.msra.mxu0 %v914
        %1030 = vmatpush.msra.mxu0 %v913
        %1031 = vmatpush.msra.mxu0 %v912
        %1032 = vmatmul.f32.gmra.mxu0 %v891
        %v1033 = vpop.f32.mrf.mxu0
        %v1034 = vadd.f32 %v1014, %v1033
        %1035 = vdwg.mxu0
        %1036 = vmatpush.msra.mxu0 %v943
        %1037 = vmatpush.msra.mxu0 %v942
        %1038 = vmatpush.msra.mxu0 %v941
        %1039 = vmatpush.msra.mxu0 %v940
        %1040 = vmatpush.msra.mxu0 %v939
        %1041 = vmatpush.msra.mxu0 %v938
        %1042 = vmatpush.msra.mxu0 %v937
        %1043 = vmatpush.msra.mxu0 %v936
        %1044 = vmatpush.msra.mxu0 %v935
        %1045 = vmatpush.msra.mxu0 %v934
        %1046 = vmatpush.msra.mxu0 %v933
        %1047 = vmatpush.msra.mxu0 %v932
        %1048 = vmatpush.msra.mxu0 %v931
        %1049 = vmatpush.msra.mxu0 %v930
        %1050 = vmatpush.msra.mxu0 %v929
        %1051 = vmatpush.msra.mxu0 %v928
        %1052 = vmatmul.f32.gmra.mxu0 %v892
        %v1053 = vpop.f32.mrf.mxu0
        %v1054 = vadd.f32 %v1034, %v1053
        %1055 = vdwg.mxu0
        %1056 = vmatpush.msra.mxu0 %v959
        %1057 = vmatpush.msra.mxu0 %v958
        %1058 = vmatpush.msra.mxu0 %v957
        %1059 = vmatpush.msra.mxu0 %v956
        %1060 = vmatpush.msra.mxu0 %v955
        %1061 = vmatpush.msra.mxu0 %v954
        %1062 = vmatpush.msra.mxu0 %v953
        %1063 = vmatpush.msra.mxu0 %v952
        %1064 = vmatpush.msra.mxu0 %v951
        %1065 = vmatpush.msra.mxu0 %v950
        %1066 = vmatpush.msra.mxu0 %v949
        %1067 = vmatpush.msra.mxu0 %v948
        %1068 = vmatpush.msra.mxu0 %v947
        %1069 = vmatpush.msra.mxu0 %v946
        %1070 = vmatpush.msra.mxu0 %v945
        %1071 = vmatpush.msra.mxu0 %v944
        %1072 = vmatmul.f32.gmra.mxu0 %v893
        %v1073 = vpop.f32.mrf.mxu0
        %v1074 = vadd.f32 %v1054, %v1073
        %1075 = vdwg.mxu0
        %1076 = vmatpush.msra.mxu0 %v975
        %1077 = vmatpush.msra.mxu0 %v974
        %1078 = vmatpush.msra.mxu0 %v973
        %1079 = vmatpush.msra.mxu0 %v972
        %1080 = vmatpush.msra.mxu0 %v971
        %1081 = vmatpush.msra.mxu0 %v970
        %1082 = vmatpush.msra.mxu0 %v969
        %1083 = vmatpush.msra.mxu0 %v968
        %1084 = vmatpush.msra.mxu0 %v967
        %1085 = vmatpush.msra.mxu0 %v966
        %1086 = vmatpush.msra.mxu0 %v965
        %1087 = vmatpush.msra.mxu0 %v964
        %1088 = vmatpush.msra.mxu0 %v963
        %1089 = vmatpush.msra.mxu0 %v962
        %1090 = vmatpush.msra.mxu0 %v961
        %1091 = vmatpush.msra.mxu0 %v960
        %1092 = vmatmul.f32.gmra.mxu0 %v894
        %v1093 = vpop.f32.mrf.mxu0
        %v1094 = vadd.f32 %v1074, %v1093
        %1095 = vdwg.mxu0
        %1096 = vmatpush.msra.mxu0 %v991
        %1097 = vmatpush.msra.mxu0 %v990
        %1098 = vmatpush.msra.mxu0 %v989
        %1099 = vmatpush.msra.mxu0 %v988
        %1100 = vmatpush.msra.mxu0 %v987
        %1101 = vmatpush.msra.mxu0 %v986
        %1102 = vmatpush.msra.mxu0 %v985
        %1103 = vmatpush.msra.mxu0 %v984
        %1104 = vmatpush.msra.mxu0 %v983
        %1105 = vmatpush.msra.mxu0 %v982
        %1106 = vmatpush.msra.mxu0 %v981
        %1107 = vmatpush.msra.mxu0 %v980
        %1108 = vmatpush.msra.mxu0 %v979
        %1109 = vmatpush.msra.mxu0 %v978
        %1110 = vmatpush.msra.mxu0 %v977
        %1111 = vmatpush.msra.mxu0 %v976
        %1112 = vmatmul.f32.gmra.mxu0 %v895
        %v1113 = vpop.f32.mrf.mxu0
        %v1114 = vadd.f32 %v1094, %v1113
        %1115 = vdwg.mxu0
        %vm1116 = vcmp.ge.f32.partialorder %v1114, 0.0
        %v1117 = vmul.f32 %v1114, 0.01
        %v1118 = vsel %vm1116, %v1114, %v1117
        %1119 = vst [vmem:[%s861] sm:$0xff] %v1118
        %v1120 = vld [vmem:[%s739] sm:$0xff]
        %v1121 = vld [vmem:[%s739 + $0x8] sm:$0xff]
        %v1122 = vld [vmem:[%s739 + $0x10] sm:$0xff]
        %v1123 = vld [vmem:[%s739 + $0x18] sm:$0xff]
        %v1124 = vld [vmem:[%s739 + $0x20] sm:$0xff]
        %v1125 = vld [vmem:[%s739 + $0x28] sm:$0xff]
        %v1126 = vld [vmem:[#allocation13] sm:$0xff]
        %v1127 = vld [vmem:[#allocation13 + $0x8] sm:$0xff]
        %v1128 = vld [vmem:[#allocation13 + $0x10] sm:$0xff]
        %v1129 = vld [vmem:[#allocation13 + $0x18] sm:$0xff]
        %v1130 = vld [vmem:[#allocation13 + $0x20] sm:$0xff]
        %v1131 = vld [vmem:[#allocation13 + $0x28] sm:$0xff]
        %v1132 = vld [vmem:[#allocation13 + $0x30] sm:$0xff]
        %v1133 = vld [vmem:[#allocation13 + $0x38] sm:$0xff]
        %v1134 = vld [vmem:[#allocation13 + $0x40] sm:$0xff]
        %v1135 = vld [vmem:[#allocation13 + $0x48] sm:$0xff]
        %v1136 = vld [vmem:[#allocation13 + $0x50] sm:$0xff]
        %v1137 = vld [vmem:[#allocation13 + $0x58] sm:$0xff]
        %v1138 = vld [vmem:[#allocation13 + $0x60] sm:$0xff]
        %v1139 = vld [vmem:[#allocation13 + $0x68] sm:$0xff]
        %v1140 = vld [vmem:[#allocation13 + $0x70] sm:$0xff]
        %v1141 = vld [vmem:[#allocation13 + $0x78] sm:$0xff]
        %v1142 = vld [vmem:[#allocation13 + $0x80] sm:$0xff]
        %v1143 = vld [vmem:[#allocation13 + $0x88] sm:$0xff]
        %v1144 = vld [vmem:[#allocation13 + $0x90] sm:$0xff]
        %v1145 = vld [vmem:[#allocation13 + $0x98] sm:$0xff]
        %v1146 = vld [vmem:[#allocation13 + $0xa0] sm:$0xff]
        %v1147 = vld [vmem:[#allocation13 + $0xa8] sm:$0xff]
        %v1148 = vld [vmem:[#allocation13 + $0xb0] sm:$0xff]
        %v1149 = vld [vmem:[#allocation13 + $0xb8] sm:$0xff]
        %v1150 = vld [vmem:[#allocation13 + $0xc0] sm:$0xff]
        %v1151 = vld [vmem:[#allocation13 + $0xc8] sm:$0xff]
        %v1152 = vld [vmem:[#allocation13 + $0xd0] sm:$0xff]
        %v1153 = vld [vmem:[#allocation13 + $0xd8] sm:$0xff]
        %v1154 = vld [vmem:[#allocation13 + $0xe0] sm:$0xff]
        %v1155 = vld [vmem:[#allocation13 + $0xe8] sm:$0xff]
        %v1156 = vld [vmem:[#allocation13 + $0xf0] sm:$0xff]
        %v1157 = vld [vmem:[#allocation13 + $0xf8] sm:$0xff]
        %v1158 = vld [vmem:[#allocation13 + $0x100] sm:$0xff]
        %v1159 = vld [vmem:[#allocation13 + $0x108] sm:$0xff]
        %v1160 = vld [vmem:[#allocation13 + $0x110] sm:$0xff]
        %v1161 = vld [vmem:[#allocation13 + $0x118] sm:$0xff]
        %v1162 = vld [vmem:[#allocation13 + $0x120] sm:$0xff]
        %v1163 = vld [vmem:[#allocation13 + $0x128] sm:$0xff]
        %v1164 = vld [vmem:[#allocation13 + $0x130] sm:$0xff]
        %v1165 = vld [vmem:[#allocation13 + $0x138] sm:$0xff]
        %v1166 = vld [vmem:[#allocation13 + $0x140] sm:$0xff]
        %v1167 = vld [vmem:[#allocation13 + $0x148] sm:$0xff]
        %v1168 = vld [vmem:[#allocation13 + $0x150] sm:$0xff]
        %v1169 = vld [vmem:[#allocation13 + $0x158] sm:$0xff]
        %v1170 = vld [vmem:[#allocation13 + $0x160] sm:$0xff]
        %v1171 = vld [vmem:[#allocation13 + $0x168] sm:$0xff]
        %v1172 = vld [vmem:[#allocation13 + $0x170] sm:$0xff]
        %v1173 = vld [vmem:[#allocation13 + $0x178] sm:$0xff]
        %v1174 = vld [vmem:[#allocation13 + $0x180] sm:$0xff]
        %v1175 = vld [vmem:[#allocation13 + $0x188] sm:$0xff]
        %v1176 = vld [vmem:[#allocation13 + $0x190] sm:$0xff]
        %v1177 = vld [vmem:[#allocation13 + $0x198] sm:$0xff]
        %v1178 = vld [vmem:[#allocation13 + $0x1a0] sm:$0xff]
        %v1179 = vld [vmem:[#allocation13 + $0x1a8] sm:$0xff]
        %v1180 = vld [vmem:[#allocation13 + $0x1b0] sm:$0xff]
        %v1181 = vld [vmem:[#allocation13 + $0x1b8] sm:$0xff]
        %v1182 = vld [vmem:[#allocation13 + $0x1c0] sm:$0xff]
        %v1183 = vld [vmem:[#allocation13 + $0x1c8] sm:$0xff]
        %v1184 = vld [vmem:[#allocation13 + $0x1d0] sm:$0xff]
        %v1185 = vld [vmem:[#allocation13 + $0x1d8] sm:$0xff]
        %v1186 = vld [vmem:[#allocation13 + $0x1e0] sm:$0xff]
        %v1187 = vld [vmem:[#allocation13 + $0x1e8] sm:$0xff]
        %v1188 = vld [vmem:[#allocation13 + $0x1f0] sm:$0xff]
        %v1189 = vld [vmem:[#allocation13 + $0x1f8] sm:$0xff]
        %v1190 = vld [vmem:[#allocation13 + $0x200] sm:$0xff]
        %v1191 = vld [vmem:[#allocation13 + $0x208] sm:$0xff]
        %v1192 = vld [vmem:[#allocation13 + $0x210] sm:$0xff]
        %v1193 = vld [vmem:[#allocation13 + $0x218] sm:$0xff]
        %v1194 = vld [vmem:[#allocation13 + $0x220] sm:$0xff]
        %v1195 = vld [vmem:[#allocation13 + $0x228] sm:$0xff]
        %v1196 = vld [vmem:[#allocation13 + $0x230] sm:$0xff]
        %v1197 = vld [vmem:[#allocation13 + $0x238] sm:$0xff]
        %v1198 = vld [vmem:[#allocation13 + $0x240] sm:$0xff]
        %v1199 = vld [vmem:[#allocation13 + $0x248] sm:$0xff]
        %v1200 = vld [vmem:[#allocation13 + $0x250] sm:$0xff]
        %v1201 = vld [vmem:[#allocation13 + $0x258] sm:$0xff]
        %v1202 = vld [vmem:[#allocation13 + $0x260] sm:$0xff]
        %v1203 = vld [vmem:[#allocation13 + $0x268] sm:$0xff]
        %v1204 = vld [vmem:[#allocation13 + $0x270] sm:$0xff]
        %v1205 = vld [vmem:[#allocation13 + $0x278] sm:$0xff]
        %v1206 = vld [vmem:[#allocation13 + $0x280] sm:$0xff]
        %v1207 = vld [vmem:[#allocation13 + $0x288] sm:$0xff]
        %v1208 = vld [vmem:[#allocation13 + $0x290] sm:$0xff]
        %v1209 = vld [vmem:[#allocation13 + $0x298] sm:$0xff]
        %v1210 = vld [vmem:[#allocation13 + $0x2a0] sm:$0xff]
        %v1211 = vld [vmem:[#allocation13 + $0x2a8] sm:$0xff]
        %v1212 = vld [vmem:[#allocation13 + $0x2b0] sm:$0xff]
        %v1213 = vld [vmem:[#allocation13 + $0x2b8] sm:$0xff]
        %v1214 = vld [vmem:[#allocation13 + $0x2c0] sm:$0xff]
        %v1215 = vld [vmem:[#allocation13 + $0x2c8] sm:$0xff]
        %v1216 = vld [vmem:[#allocation13 + $0x2d0] sm:$0xff]
        %v1217 = vld [vmem:[#allocation13 + $0x2d8] sm:$0xff]
        %v1218 = vld [vmem:[#allocation13 + $0x2e0] sm:$0xff]
        %v1219 = vld [vmem:[#allocation13 + $0x2e8] sm:$0xff]
        %v1220 = vld [vmem:[#allocation13 + $0x2f0] sm:$0xff]
        %v1221 = vld [vmem:[#allocation13 + $0x2f8] sm:$0xff]
        %v1222 = vld [vmem:[%s11] sm:$0x1]
        %v1224 = vperm.slane %v1222, 0
        %1226 = vmatpush.msra.mxu0 %v1141
        %1227 = vmatpush.msra.mxu0 %v1140
        %1228 = vmatpush.msra.mxu0 %v1139
        %1229 = vmatpush.msra.mxu0 %v1138
        %1230 = vmatpush.msra.mxu0 %v1137
        %1231 = vmatpush.msra.mxu0 %v1136
        %1232 = vmatpush.msra.mxu0 %v1135
        %1233 = vmatpush.msra.mxu0 %v1134
        %1234 = vmatpush.msra.mxu0 %v1133
        %1235 = vmatpush.msra.mxu0 %v1132
        %1236 = vmatpush.msra.mxu0 %v1131
        %1237 = vmatpush.msra.mxu0 %v1130
        %1238 = vmatpush.msra.mxu0 %v1129
        %1239 = vmatpush.msra.mxu0 %v1128
        %1240 = vmatpush.msra.mxu0 %v1127
        %1241 = vmatpush.msra.mxu0 %v1126
        %1242 = vmatmul.f32.gmra.mxu0 %v1120
        %v1243 = vpop.f32.mrf.mxu0
        %v1244 = vadd.f32 %v1224, %v1243
        %1245 = vdwg.mxu0
        %1246 = vmatpush.msra.mxu0 %v1157
        %1247 = vmatpush.msra.mxu0 %v1156
        %1248 = vmatpush.msra.mxu0 %v1155
        %1249 = vmatpush.msra.mxu0 %v1154
        %1250 = vmatpush.msra.mxu0 %v1153
        %1251 = vmatpush.msra.mxu0 %v1152
        %1252 = vmatpush.msra.mxu0 %v1151
        %1253 = vmatpush.msra.mxu0 %v1150
        %1254 = vmatpush.msra.mxu0 %v1149
        %1255 = vmatpush.msra.mxu0 %v1148
        %1256 = vmatpush.msra.mxu0 %v1147
        %1257 = vmatpush.msra.mxu0 %v1146
        %1258 = vmatpush.msra.mxu0 %v1145
        %1259 = vmatpush.msra.mxu0 %v1144
        %1260 = vmatpush.msra.mxu0 %v1143
        %1261 = vmatpush.msra.mxu0 %v1142
        %1262 = vmatmul.f32.gmra.mxu0 %v1121
        %v1263 = vpop.f32.mrf.mxu0
        %v1264 = vadd.f32 %v1244, %v1263
        %1265 = vdwg.mxu0
        %1266 = vmatpush.msra.mxu0 %v1173
        %1267 = vmatpush.msra.mxu0 %v1172
        %1268 = vmatpush.msra.mxu0 %v1171
        %1269 = vmatpush.msra.mxu0 %v1170
        %1270 = vmatpush.msra.mxu0 %v1169
        %1271 = vmatpush.msra.mxu0 %v1168
        %1272 = vmatpush.msra.mxu0 %v1167
        %1273 = vmatpush.msra.mxu0 %v1166
        %1274 = vmatpush.msra.mxu0 %v1165
        %1275 = vmatpush.msra.mxu0 %v1164
        %1276 = vmatpush.msra.mxu0 %v1163
        %1277 = vmatpush.msra.mxu0 %v1162
        %1278 = vmatpush.msra.mxu0 %v1161
        %1279 = vmatpush.msra.mxu0 %v1160
        %1280 = vmatpush.msra.mxu0 %v1159
        %1281 = vmatpush.msra.mxu0 %v1158
        %1282 = vmatmul.f32.gmra.mxu0 %v1122
        %v1283 = vpop.f32.mrf.mxu0
        %v1284 = vadd.f32 %v1264, %v1283
        %1285 = vdwg.mxu0
        %1286 = vmatpush.msra.mxu0 %v1189
        %1287 = vmatpush.msra.mxu0 %v1188
        %1288 = vmatpush.msra.mxu0 %v1187
        %1289 = vmatpush.msra.mxu0 %v1186
        %1290 = vmatpush.msra.mxu0 %v1185
        %1291 = vmatpush.msra.mxu0 %v1184
        %1292 = vmatpush.msra.mxu0 %v1183
        %1293 = vmatpush.msra.mxu0 %v1182
        %1294 = vmatpush.msra.mxu0 %v1181
        %1295 = vmatpush.msra.mxu0 %v1180
        %1296 = vmatpush.msra.mxu0 %v1179
        %1297 = vmatpush.msra.mxu0 %v1178
        %1298 = vmatpush.msra.mxu0 %v1177
        %1299 = vmatpush.msra.mxu0 %v1176
        %1300 = vmatpush.msra.mxu0 %v1175
        %1301 = vmatpush.msra.mxu0 %v1174
        %1302 = vmatmul.f32.gmra.mxu0 %v1123
        %v1303 = vpop.f32.mrf.mxu0
        %v1304 = vadd.f32 %v1284, %v1303
        %1305 = vdwg.mxu0
        %1306 = vmatpush.msra.mxu0 %v1205
        %1307 = vmatpush.msra.mxu0 %v1204
        %1308 = vmatpush.msra.mxu0 %v1203
        %1309 = vmatpush.msra.mxu0 %v1202
        %1310 = vmatpush.msra.mxu0 %v1201
        %1311 = vmatpush.msra.mxu0 %v1200
        %1312 = vmatpush.msra.mxu0 %v1199
        %1313 = vmatpush.msra.mxu0 %v1198
        %1314 = vmatpush.msra.mxu0 %v1197
        %1315 = vmatpush.msra.mxu0 %v1196
        %1316 = vmatpush.msra.mxu0 %v1195
        %1317 = vmatpush.msra.mxu0 %v1194
        %1318 = vmatpush.msra.mxu0 %v1193
        %1319 = vmatpush.msra.mxu0 %v1192
        %1320 = vmatpush.msra.mxu0 %v1191
        %1321 = vmatpush.msra.mxu0 %v1190
        %1322 = vmatmul.f32.gmra.mxu0 %v1124
        %v1323 = vpop.f32.mrf.mxu0
        %v1324 = vadd.f32 %v1304, %v1323
        %1325 = vdwg.mxu0
        %1326 = vmatpush.msra.mxu0 %v1221
        %1327 = vmatpush.msra.mxu0 %v1220
        %1328 = vmatpush.msra.mxu0 %v1219
        %1329 = vmatpush.msra.mxu0 %v1218
        %1330 = vmatpush.msra.mxu0 %v1217
        %1331 = vmatpush.msra.mxu0 %v1216
        %1332 = vmatpush.msra.mxu0 %v1215
        %1333 = vmatpush.msra.mxu0 %v1214
        %1334 = vmatpush.msra.mxu0 %v1213
        %1335 = vmatpush.msra.mxu0 %v1212
        %1336 = vmatpush.msra.mxu0 %v1211
        %1337 = vmatpush.msra.mxu0 %v1210
        %1338 = vmatpush.msra.mxu0 %v1209
        %1339 = vmatpush.msra.mxu0 %v1208
        %1340 = vmatpush.msra.mxu0 %v1207
        %1341 = vmatpush.msra.mxu0 %v1206
        %1342 = vmatmul.f32.gmra.mxu0 %v1125
        %v1343 = vpop.f32.mrf.mxu0
        %v1344 = vadd.f32 %v1324, %v1343
        %1345 = vdwg.mxu0
        %vm1346 = vcmp.ge.f32.partialorder %v1344, 0.0
        %v1347 = vmul.f32 %v1344, 0.01
        %v1348 = vsel %vm1346, %v1344, %v1347
        %1349 = vst [vmem:[%s868] sm:$0xff] %v1348
        %v1350 = vld [vmem:[%s749] sm:$0xff]
        %v1351 = vld [vmem:[#allocation14] sm:$0xff]
        %v1352 = vld [vmem:[#allocation14 + $0x8] sm:$0xff]
        %v1353 = vld [vmem:[#allocation14 + $0x10] sm:$0xff]
        %v1354 = vld [vmem:[#allocation14 + $0x18] sm:$0x7]
        %v1355 = vld [vmem:[%s12] sm:$0x1]
        %v1357 = vperm.slane %v1355, 0
        %vm1359 = vcmask 220160
        %v1361 = vsel %vm1359, %v1350, 0
        %vm1363 = vcmask 1042432
        %v1365 = vsel %vm1363, %v1354, 0
        %1367 = vmatpush.msra.mxu0 0.0
        %1368 = vmatpush.msra.mxu0 0.0
        %1369 = vmatpush.msra.mxu0 0.0
        %1370 = vmatpush.msra.mxu0 0.0
        %1371 = vmatpush.msra.mxu0 0.0
        %1372 = vmatpush.msra.mxu0 0.0
        %1373 = vmatpush.msra.mxu0 0.0
        %1374 = vmatpush.msra.mxu0 0.0
        %1375 = vmatpush.msra.mxu0 0.0
        %1376 = vmatpush.msra.mxu0 0.0
        %1377 = vmatpush.msra.mxu0 0.0
        %1378 = vmatpush.msra.mxu0 0.0
        %1379 = vmatpush.msra.mxu0 %v1365
        %1380 = vmatpush.msra.mxu0 %v1353
        %1381 = vmatpush.msra.mxu0 %v1352
        %1382 = vmatpush.msra.mxu0 %v1351
        %1383 = vmatmul.f32.gmra.mxu0 %v1361
        %v1384 = vpop.f32.mrf.mxu0
        %v1385 = vadd.f32 %v1357, %v1384
        %1386 = vdwg.mxu0
        %vm1387 = vcmp.ge.f32.partialorder %v1385, 0.0
        %v1388 = vmul.f32 %v1385, 0.01
        %v1389 = vsel %vm1387, %v1385, %v1388
        %1390 = vst [vmem:[%s875] sm:$0xff] %v1389
        %v1391 = vld [vmem:[%s759] sm:$0xff]
        %v1392 = vld [vmem:[#allocation16] sm:$0xff]
        %v1393 = vld [vmem:[#allocation16 + $0x8] sm:$0x7]
        %v1394 = vld [vmem:[%s13] sm:$0x1]
        %v1396 = vperm.slane %v1394, 0
        %vm1398 = vcmask 89088
        %v1400 = vsel %vm1398, %v1391, 0
        %v1403 = vsel %vm1363, %v1393, 0
        %1405 = vmatpush.msra.mxu0 0.0
        %1406 = vmatpush.msra.mxu0 0.0
        %1407 = vmatpush.msra.mxu0 0.0
        %1408 = vmatpush.msra.mxu0 0.0
        %1409 = vmatpush.msra.mxu0 0.0
        %1410 = vmatpush.msra.mxu0 0.0
        %1411 = vmatpush.msra.mxu0 0.0
        %1412 = vmatpush.msra.mxu0 0.0
        %1413 = vmatpush.msra.mxu0 0.0
        %1414 = vmatpush.msra.mxu0 0.0
        %1415 = vmatpush.msra.mxu0 0.0
        %1416 = vmatpush.msra.mxu0 0.0
        %1417 = vmatpush.msra.mxu0 0.0
        %1418 = vmatpush.msra.mxu0 0.0
        %1419 = vmatpush.msra.mxu0 %v1403
        %1420 = vmatpush.msra.mxu0 %v1392
        %1421 = vmatmul.f32.gmra.mxu0 %v1400
        %v1422 = vpop.f32.mrf.mxu0
        %v1423 = vadd.f32 %v1396, %v1422
        %1424 = vdwg.mxu0
        %vm1425 = vcmp.ge.f32.partialorder %v1423, 0.0
        %v1426 = vmul.f32 %v1423, 0.01
        %v1427 = vsel %vm1425, %v1423, %v1426
        %1428 = vst [vmem:[%s882] sm:$0xff] %v1427
        %v1429 = vld [vmem:[%s769] sm:$0xff]
        %v1430 = vld [vmem:[#allocation17] sm:$0xff]
        %v1431 = vld [vmem:[#allocation17 + $0x8] sm:$0x1]
        %v1432 = vld [vmem:[%s14] sm:$0x1]
        %v1434 = vperm.slane %v1432, 0
        %vm1436 = vcmask 72704
        %v1438 = vsel %vm1436, %v1429, 0
        %vm1440 = vcmask 1040384
        %v1442 = vsel %vm1440, %v1431, 0
        %1444 = vmatpush.msra.mxu0 0.0
        %1445 = vmatpush.msra.mxu0 0.0
        %1446 = vmatpush.msra.mxu0 0.0
        %1447 = vmatpush.msra.mxu0 0.0
        %1448 = vmatpush.msra.mxu0 0.0
        %1449 = vmatpush.msra.mxu0 0.0
        %1450 = vmatpush.msra.mxu0 0.0
        %1451 = vmatpush.msra.mxu0 0.0
        %1452 = vmatpush.msra.mxu0 0.0
        %1453 = vmatpush.msra.mxu0 0.0
        %1454 = vmatpush.msra.mxu0 0.0
        %1455 = vmatpush.msra.mxu0 0.0
        %1456 = vmatpush.msra.mxu0 0.0
        %1457 = vmatpush.msra.mxu0 0.0
        %1458 = vmatpush.msra.mxu0 %v1442
        %1459 = vmatpush.msra.mxu0 %v1430
        %1460 = vmatmul.f32.gmra.mxu0 %v1438
        %v1461 = vpop.f32.mrf.mxu0
        %v1462 = vadd.f32 %v1434, %v1461
        %1463 = vdwg.mxu0
        %vm1464 = vcmp.ge.f32.partialorder %v1462, 0.0
        %v1465 = vmul.f32 %v1462, 0.01
        %v1466 = vsel %vm1464, %v1462, %v1465
        %1467 = vst [vmem:[%s889] sm:$0xff] %v1466
        %s1468 = sand.u32 %s400, 1
        %s1469 = scalar_lea.sflag [#allocation4], %s1468
        %s1470 = sand.u32 %s400, 1
        %s1471 = smul.addr %s1470, 8
        %s1472 = scalar_lea.vmem [#allocation19], %s1471
        %s1473 = sand.u32 %s52, 1
        %s1474 = scalar_lea.sflag [#allocation21], %s1473
        %s1475 = sand.u32 %s426, 1
        %s1476 = smul.addr %s1475, 8
        %s1477 = scalar_lea.vmem [#allocation20], %s1476
        %s1478 = sand.u32 %s52, 1
        %s1479 = scalar_lea.sflag [#allocation21], %s1478
        %s1480 = sand.u32 %s452, 1
        %s1481 = smul.addr %s1480, 8
        %s1482 = scalar_lea.vmem [#allocation22], %s1481
        %s1483 = sand.u32 %s52, 1
        %s1484 = scalar_lea.sflag [#allocation24], %s1483
        %s1485 = sand.u32 %s478, 1
        %s1486 = smul.addr %s1485, 8
        %s1487 = scalar_lea.vmem [#allocation23], %s1486
        %s1488 = sand.u32 %s52, 1
        %s1489 = scalar_lea.sflag [#allocation24], %s1488
        %s1490 = sand.u32 %s504, 1
        %s1491 = smul.addr %s1490, 8
        %s1492 = scalar_lea.vmem [#allocation25], %s1491
        // Predicated region
        $region121: #{tpu_custom_call.1} parent=79 // pred_check
          %p1493 = pneg %p410
        $region122: #{tpu_custom_call.1} parent=79 // pred_check_branch
          %1495 = sbr.rel (%p1493) target = $region124
        $region123: #{tpu_custom_call.1} parent=79 // pred_region
          %1497 = vsyncadd %s1469, 0
          %s1498 = smul.addr %s52, 8
          %s1499 = scalar_lea.hbm %s15, %s1498
          %s1501 = sshll.u32 %s1472, 4
          %s1502 = int_to_ptr.vmem [resolvable:$true] %s1501
          %s1503 = sshll.u32 %s1499, 4
          %s1504 = int_to_ptr.hbm [resolvable:$true] %s1503
          %1506 = dma.vmem_to_hbm [thread:$0]  %s1502, 128, %s1504, %s1469
        $region124: #{tpu_custom_call.1} parent=79 // pred_fallthru
          _
        // Predicated region
        $region125: #{tpu_custom_call.1} parent=79 // pred_check
          %p1507 = pneg %p436
        $region126: #{tpu_custom_call.1} parent=79 // pred_check_branch
          %1509 = sbr.rel (%p1507) target = $region128
        $region127: #{tpu_custom_call.1} parent=79 // pred_region
          %1511 = vsyncadd %s1474, 0
          %s1512 = smul.addr %s52, 8
          %s1513 = scalar_lea.hbm %s16, %s1512
          %s1515 = sshll.u32 %s1477, 4
          %s1516 = int_to_ptr.vmem [resolvable:$true] %s1515
          %s1517 = sshll.u32 %s1513, 4
          %s1518 = int_to_ptr.hbm [resolvable:$true] %s1517
          %1520 = dma.vmem_to_hbm [thread:$0]  %s1516, 128, %s1518, %s1474
        $region128: #{tpu_custom_call.1} parent=79 // pred_fallthru
          _
        // Predicated region
        $region129: #{tpu_custom_call.1} parent=79 // pred_check
          %p1521 = pneg %p462
        $region130: #{tpu_custom_call.1} parent=79 // pred_check_branch
          %1523 = sbr.rel (%p1521) target = $region132
        $region131: #{tpu_custom_call.1} parent=79 // pred_region
          %1525 = vsyncadd %s1479, 0
          %s1526 = smul.addr %s52, 8
          %s1527 = scalar_lea.hbm %s17, %s1526
          %s1529 = sshll.u32 %s1482, 4
          %s1530 = int_to_ptr.vmem [resolvable:$true] %s1529
          %s1531 = sshll.u32 %s1527, 4
          %s1532 = int_to_ptr.hbm [resolvable:$true] %s1531
          %1534 = dma.vmem_to_hbm [thread:$0]  %s1530, 128, %s1532, %s1479
        $region132: #{tpu_custom_call.1} parent=79 // pred_fallthru
          _
        // Predicated region
        $region133: #{tpu_custom_call.1} parent=79 // pred_check
          %p1535 = pneg %p488
        $region134: #{tpu_custom_call.1} parent=79 // pred_check_branch
          %1537 = sbr.rel (%p1535) target = $region136
        $region135: #{tpu_custom_call.1} parent=79 // pred_region
          %1539 = vsyncadd %s1484, 0
          %s1540 = smul.addr %s52, 8
          %s1541 = scalar_lea.hbm %s18, %s1540
          %s1543 = sshll.u32 %s1487, 4
          %s1544 = int_to_ptr.vmem [resolvable:$true] %s1543
          %s1545 = sshll.u32 %s1541, 4
          %s1546 = int_to_ptr.hbm [resolvable:$true] %s1545
          %1548 = dma.vmem_to_hbm [thread:$0]  %s1544, 128, %s1546, %s1484
        $region136: #{tpu_custom_call.1} parent=79 // pred_fallthru
          _
        // Predicated region
        $region137: #{tpu_custom_call.1} parent=79 // pred_check
          %p1549 = pneg %p514
        $region138: #{tpu_custom_call.1} parent=79 // pred_check_branch
          %1551 = sbr.rel (%p1549) target = $region140
        $region139: #{tpu_custom_call.1} parent=79 // pred_region
          %1553 = vsyncadd %s1489, 0
          %s1554 = smul.addr %s52, 8
          %s1555 = scalar_lea.hbm %s19, %s1554
          %s1557 = sshll.u32 %s1492, 4
          %s1558 = int_to_ptr.vmem [resolvable:$true] %s1557
          %s1559 = sshll.u32 %s1555, 4
          %s1560 = int_to_ptr.hbm [resolvable:$true] %s1559
          %1562 = dma.vmem_to_hbm [thread:$0]  %s1558, 128, %s1560, %s1489
        $region140: #{tpu_custom_call.1} parent=79 // pred_fallthru
          _
      $region80: #{tpu_custom_call.1} parent=5 // pred_fallthru
        _
      %p1563 = scmp.le.s32.totalorder 2, %s47
      // Predicated region
      $region141: #{tpu_custom_call.1} parent=5 // pred_check
        %p1564 = pneg %p1563
      $region142: #{tpu_custom_call.1} parent=5 // pred_check_branch
        %1566 = sbr.rel (%p1564) target = $region144
      $region143: #{tpu_custom_call.1} parent=5 // pred_region
        %s1567 = ssub.s32 %s47, 2
        // Predicated region
        $region145: #{tpu_custom_call.1} parent=143 // pred_check
          %p1568 = pneg %p416
        $region146: #{tpu_custom_call.1} parent=143 // pred_check_branch
          %1570 = sbr.rel (%p1568) target = $region148
        $region147: #{tpu_custom_call.1} parent=143 // pred_region
          %s1571 = sand.u32 %s401, 1
          %s1572 = scalar_lea.sflag [#allocation4], %s1571
          %s1573 = sand.u32 %s401, 1
          %s1574 = smul.addr %s1573, 8
          %s1575 = scalar_lea.vmem [#allocation19], %s1574
          %1577 = dma.done %s1572, 128
        $region148: #{tpu_custom_call.1} parent=143 // pred_fallthru
          _
        // Predicated region
        $region149: #{tpu_custom_call.1} parent=143 // pred_check
          %p1578 = pneg %p442
        $region150: #{tpu_custom_call.1} parent=143 // pred_check_branch
          %1580 = sbr.rel (%p1578) target = $region152
        $region151: #{tpu_custom_call.1} parent=143 // pred_region
          %s1581 = sand.u32 %s53, 1
          %s1582 = scalar_lea.sflag [#allocation21], %s1581
          %s1583 = sand.u32 %s427, 1
          %s1584 = smul.addr %s1583, 8
          %s1585 = scalar_lea.vmem [#allocation20], %s1584
          %1587 = dma.done %s1582, 128
        $region152: #{tpu_custom_call.1} parent=143 // pred_fallthru
          _
        // Predicated region
        $region153: #{tpu_custom_call.1} parent=143 // pred_check
          %p1588 = pneg %p468
        $region154: #{tpu_custom_call.1} parent=143 // pred_check_branch
          %1590 = sbr.rel (%p1588) target = $region156
        $region155: #{tpu_custom_call.1} parent=143 // pred_region
          %s1591 = sand.u32 %s53, 1
          %s1592 = scalar_lea.sflag [#allocation21], %s1591
          %s1593 = sand.u32 %s453, 1
          %s1594 = smul.addr %s1593, 8
          %s1595 = scalar_lea.vmem [#allocation22], %s1594
          %1597 = dma.done %s1592, 128
        $region156: #{tpu_custom_call.1} parent=143 // pred_fallthru
          _
        // Predicated region
        $region157: #{tpu_custom_call.1} parent=143 // pred_check
          %p1598 = pneg %p494
        $region158: #{tpu_custom_call.1} parent=143 // pred_check_branch
          %1600 = sbr.rel (%p1598) target = $region160
        $region159: #{tpu_custom_call.1} parent=143 // pred_region
          %s1601 = sand.u32 %s53, 1
          %s1602 = scalar_lea.sflag [#allocation24], %s1601
          %s1603 = sand.u32 %s479, 1
          %s1604 = smul.addr %s1603, 8
          %s1605 = scalar_lea.vmem [#allocation23], %s1604
          %1607 = dma.done %s1602, 128
        $region160: #{tpu_custom_call.1} parent=143 // pred_fallthru
          _
        // Predicated region
        $region161: #{tpu_custom_call.1} parent=143 // pred_check
          %p1608 = pneg %p520
        $region162: #{tpu_custom_call.1} parent=143 // pred_check_branch
          %1610 = sbr.rel (%p1608) target = $region164
        $region163: #{tpu_custom_call.1} parent=143 // pred_region
          %s1611 = sand.u32 %s53, 1
          %s1612 = scalar_lea.sflag [#allocation24], %s1611
          %s1613 = sand.u32 %s505, 1
          %s1614 = smul.addr %s1613, 8
          %s1615 = scalar_lea.vmem [#allocation25], %s1614
          %1617 = dma.done %s1612, 128
        $region164: #{tpu_custom_call.1} parent=143 // pred_fallthru
          _
      $region144: #{tpu_custom_call.1} parent=5 // pred_fallthru
        _
    $region6: #{tpu_custom_call.1} parent=1 // loop_footer
      %s51 = sadd.s32 1, %s47
    $region7: #{tpu_custom_call.1} parent=1 // loop_footer_branch
      %46 = sbr.rel target = $region3
    $region8: #{tpu_custom_call.1} parent=1 // loop_exit
      _
    %1618 = vsyncpa [#allocation3], 1
    %s1619 = scalar_lea.sflag [#allocation3], 1
    %1620 = vsyncpa %s1619, 1
    %1621 = vsyncpa [#allocation6], 1
    %s1622 = scalar_lea.sflag [#allocation6], 1
    %1623 = vsyncpa %s1622, 1
    %1624 = vsyncpa [#allocation9], 1
    %s1625 = scalar_lea.sflag [#allocation9], 1
    %1626 = vsyncpa %s1625, 1
    %1627 = vsyncpa [#allocation12], 1
    %1628 = vsyncpa [#allocation15], 1
    %1629 = vsyncpa [#allocation18], 1
    %1630 = vsyncpa [#allocation4], 1
    %s1631 = scalar_lea.sflag [#allocation4], 1
    %1632 = vsyncpa %s1631, 1
    %1633 = vsyncpa [#allocation21], 1
    %s1634 = scalar_lea.sflag [#allocation21], 1
    %1635 = vsyncpa %s1634, 1
    %1636 = vsyncpa [#allocation24], 1
    %s1637 = scalar_lea.sflag [#allocation24], 1
    %1638 = vsyncpa %s1637, 1

</llo_original>
